<compile_context>
chip_gen: v7x
topology: tpu7x:2x2x1
jax: 0.10.0
libtpu: 0.0.40
codegen_flags: <defaults>
</compile_context>

<pallas_src>
import functools
import math

import jax
import jax.numpy as jnp
from jax import lax
from jax.experimental import pallas as pl
from jax.experimental.pallas import tpu as pltpu

EPS = 1e-6


# ----------------------------- in-kernel helpers -----------------------------

def _layernorm(x, g, b):
    """Annotated-Transformer LayerNorm: unbiased std, eps added to std (f32)."""
    n = x.shape[-1]
    mean = jnp.mean(x, axis=-1, keepdims=True)
    diff = x - mean
    var = jnp.sum(diff * diff, axis=-1, keepdims=True) * (1.0 / (n - 1))
    inv = pl.reciprocal(jnp.sqrt(var) + EPS, approx=True)   # EUP slot, ~free
    return g * diff * inv + b


# ------------------------------- fused kernels --------------------------------

def _attn_sublayer_kernel(x_ref, kv_ref, g_ref, b_ref,
                          wq_ref, bq_ref, wkv_ref, bkv_ref, wo_ref, bo_ref,
                          o_ref, *, heads, use_bf16):
    """One batch element: out = x + Wo @ MHA(LN0(x), kv, kv)."""
    x = x_ref[0]                    # (Tq, D)  f32
    kv = kv_ref[0]                  # (Tkv, D) f32
    Tq, D = x.shape
    H = heads
    dk = D // H
    md = jnp.bfloat16 if use_bf16 else jnp.float32

    # LN0 in f32 (keep VPU/EUP work f32 for v5e).
    xn = _layernorm(x, g_ref[...], b_ref[...])

    # Q projection; fold 1/sqrt(dk) into Q (touches Tq*D, not Tq*Tkv).
    q = jnp.dot(xn.astype(md), wq_ref[...].astype(md),
                preferred_element_type=jnp.float32) + bq_ref[...]
    q = q * (1.0 / math.sqrt(dk))

    # Fused K/V projection: kv is read once, one (D, 2D) matmul.
    kvp = jnp.dot(kv.astype(md), wkv_ref[...].astype(md),
                  preferred_element_type=jnp.float32) + bkv_ref[...]
    k = kvp[:, :D]                  # (Tkv, D)
    v = kvp[:, D:]                  # (Tkv, D)

    # Per-head attention; dot_general contracts the dk axes (no K transpose).
    trans_b = (((1,), (1,)), ((), ()))
    ctx_heads = []
    for h in range(H):              # static unroll; H is small
        qh = q[:, h * dk:(h + 1) * dk]          # (Tq, dk)
        kh = k[:, h * dk:(h + 1) * dk]          # (Tkv, dk)
        vh = v[:, h * dk:(h + 1) * dk]          # (Tkv, dk)
        s = lax.dot_general(qh, kh, trans_b,
                            preferred_element_type=jnp.float32)   # (Tq, Tkv)
        m = jnp.max(s, axis=-1, keepdims=True)
        p = jnp.exp(s - m)
        p = p * pl.reciprocal(jnp.sum(p, axis=-1, keepdims=True), approx=True)
        ctx_heads.append(jnp.dot(p.astype(md), vh.astype(md),
                                 preferred_element_type=jnp.float32))
    ctx = jnp.concatenate(ctx_heads, axis=-1)   # (Tq, D) lane-dense

    # Output projection + residual; lane-dense (Tq, D) store.
    attn = jnp.dot(ctx.astype(md), wo_ref[...].astype(md),
                   preferred_element_type=jnp.float32) + bo_ref[...]
    o_ref[0] = (x + attn).astype(o_ref.dtype)


def _ffn_sublayer_kernel(x_ref, g_ref, b_ref, w1_ref, b1_ref, w2_ref, b2_ref,
                         o_ref, *, use_bf16):
    """Row tile: out = x + W2 @ relu(W1 @ LN1(x) + b1) + b2."""
    x = x_ref[...]                  # (tile_n, D)
    md = jnp.bfloat16 if use_bf16 else jnp.float32
    xn = _layernorm(x, g_ref[...], b_ref[...])
    h = jnp.dot(xn.astype(md), w1_ref[...].astype(md),
                preferred_element_type=jnp.float32) + b1_ref[...]
    h = jnp.maximum(h, 0.0)
    ff = jnp.dot(h.astype(md), w2_ref[...].astype(md),
                 preferred_element_type=jnp.float32) + b2_ref[...]
    o_ref[...] = (x + ff).astype(o_ref.dtype)
    # TODO(synk): at production sizes on v7x (64 MiB VMEM), tile Dff as a
    # reduction grid axis with a VMEM f32 accumulator instead of holding full
    # (D,Dff)+(Dff,D) weights plus the (tile_n,Dff) intermediate resident.


# ------------------------------ kernel wrappers -------------------------------

def attention_sublayer(x, kv, p, *, heads, use_bf16=False):
    B, Tq, D = x.shape
    Tkv = kv.shape[1]
    # Pre-concatenate K/V weights so the kernel does one (D, 2D) matmul.
    wkv = jnp.concatenate([p["wk"], p["wv"]], axis=1)           # (D, 2D)
    bkv = jnp.concatenate([p["bk"], p["bv"]], axis=0)           # (2D,)
    kern = functools.partial(_attn_sublayer_kernel, heads=heads,
                             use_bf16=use_bf16)
    const = lambda b: (0, 0)
    return pl.pallas_call(
        kern,
        out_shape=jax.ShapeDtypeStruct((B, Tq, D), x.dtype),
        grid=(B,),
        in_specs=[
            pl.BlockSpec((1, Tq, D), lambda b: (b, 0, 0)),       # x
            pl.BlockSpec((1, Tkv, D), lambda b: (b, 0, 0)),      # kv
            pl.BlockSpec((1, D), const),                         # ln0 gamma
            pl.BlockSpec((1, D), const),                         # ln0 beta
            pl.BlockSpec((D, D), const),                         # wq
            pl.BlockSpec((1, D), const),                         # bq
            pl.BlockSpec((D, 2 * D), const),                     # wkv
            pl.BlockSpec((1, 2 * D), const),                     # bkv
            pl.BlockSpec((D, D), const),                         # wo
            pl.BlockSpec((1, D), const),                         # bo
        ],
        out_specs=pl.BlockSpec((1, Tq, D), lambda b: (b, 0, 0)),
        compiler_params=pltpu.CompilerParams(
            dimension_semantics=("parallel",)),
    )(x, kv,
      p["ln0_g"].reshape(1, D), p["ln0_b"].reshape(1, D),
      p["wq"], p["bq"].reshape(1, D),
      wkv, bkv.reshape(1, 2 * D),
      p["wo"], p["bo"].reshape(1, D))


def _row_tile(n, target=256):
    """Largest row tile <= target that divides n and is a multiple of 8."""
    if n <= target:
        return n
    t = target
    while t >= 8:
        if n % t == 0:
            return t
        t -= 8
    return n


def ffn_sublayer(x, p, *, use_bf16=False):
    B, T, D = x.shape
    N = B * T
    Dff = p["w1"].shape[1]
    x2 = x.reshape(N, D)
    tn = _row_tile(N)
    kern = functools.partial(_ffn_sublayer_kernel, use_bf16=use_bf16)
    const = lambda i: (0, 0)
    out = pl.pallas_call(
        kern,
        out_shape=jax.ShapeDtypeStruct((N, D), x.dtype),
        grid=(N // tn,),
        in_specs=[
            pl.BlockSpec((tn, D), lambda i: (i, 0)),             # x rows
            pl.BlockSpec((1, D), const),                         # ln1 gamma
            pl.BlockSpec((1, D), const),                         # ln1 beta
            pl.BlockSpec((D, Dff), const),                       # w1 (resident)
            pl.BlockSpec((1, Dff), const),                       # b1
            pl.BlockSpec((Dff, D), const),                       # w2 (resident)
            pl.BlockSpec((1, D), const),                         # b2
        ],
        out_specs=pl.BlockSpec((tn, D), lambda i: (i, 0)),
        compiler_params=pltpu.CompilerParams(
            dimension_semantics=("parallel",)),
    )(x2, p["ln1_g"].reshape(1, D), p["ln1_b"].reshape(1, D),
      p["w1"], p["b1"].reshape(1, Dff), p["w2"], p["b2"].reshape(1, D))
    return out.reshape(B, T, D)


def cross_attention_encoder_layer(x, kv, p, *, heads, use_bf16=False):
    # TODO(synk): dropout is identity here (eval / inference mode).
    x = attention_sublayer(x, kv, p, heads=heads, use_bf16=use_bf16)
    return ffn_sublayer(x, p, use_bf16=use_bf16)


# ------------------------------ parameter init --------------------------------

def init_params(key, D, Dff):
    ks = jax.random.split(key, 10)
    s = 0.1

    def nrm(k, shape):
        return s * jax.random.normal(k, shape, jnp.float32)

    return {
        # LayerNorms (a_2 = ones, b_2 = zeros, like the torch init)
        "ln0_g": jnp.ones((D,), jnp.float32), "ln0_b": jnp.zeros((D,), jnp.float32),
        "ln1_g": jnp.ones((D,), jnp.float32), "ln1_b": jnp.zeros((D,), jnp.float32),
        # Multi-head attention projections (D -> D)
        "wq": nrm(ks[0], (D, D)), "bq": nrm(ks[1], (D,)),
        "wk": nrm(ks[2], (D, D)), "bk": nrm(ks[3], (D,)),
        "wv": nrm(ks[4], (D, D)), "bv": nrm(ks[5], (D,)),
        "wo": nrm(ks[6], (D, D)), "bo": jnp.zeros((D,), jnp.float32),
        # Positionwise FFN: D -> Dff -> D
        "w1": nrm(ks[7], (D, Dff)), "b1": jnp.zeros((Dff,), jnp.float32),
        "w2": nrm(ks[8], (Dff, D)), "b2": jnp.zeros((D,), jnp.float32),
    }


# ---------------------------- pure-JAX reference ------------------------------

def reference_layer(x, kv, p, *, heads):
    def ln(t, g, b):
        mean = t.mean(-1, keepdims=True)
        diff = t - mean
        std = jnp.sqrt((diff * diff).sum(-1, keepdims=True) / (t.shape[-1] - 1))
        return g * diff / (std + EPS) + b

    B, Tq, D = x.shape
    Tkv = kv.shape[1]
    H = heads
    dk = D // H
    xn = ln(x, p["ln0_g"], p["ln0_b"])
    q = (xn @ p["wq"] + p["bq"]).reshape(B, Tq, H, dk).transpose(0, 2, 1, 3)
    k = (kv @ p["wk"] + p["bk"]).reshape(B, Tkv, H, dk).transpose(0, 2, 1, 3)
    v = (kv @ p["wv"] + p["bv"]).reshape(B, Tkv, H, dk).transpose(0, 2, 1, 3)
    s = jnp.einsum("bhqd,bhkd->bhqk", q, k) / math.sqrt(dk)
    a = jax.nn.softmax(s, axis=-1)
    o = jnp.einsum("bhqk,bhkd->bhqd", a, v).transpose(0, 2, 1, 3).reshape(B, Tq, D)
    x = x + o @ p["wo"] + p["bo"]
    xn = ln(x, p["ln1_g"], p["ln1_b"])
    ff = jnp.maximum(xn @ p["w1"] + p["b1"], 0.0) @ p["w2"] + p["b2"]
    return x + ff


# ------------------------------------ main -------------------------------------

if __name__ == "__main__":
    B, Tq, Tkv, D, H, Dff = 2, 8, 8, 32, 4, 64

    key = jax.random.PRNGKey(0)
    kx, kkv, kp = jax.random.split(key, 3)
    x = jax.random.normal(kx, (B, Tq, D), jnp.float32)
    kv = jax.random.normal(kkv, (B, Tkv, D), jnp.float32)
    params = init_params(kp, D, Dff)

    fwd = jax.jit(functools.partial(cross_attention_encoder_layer,
                                    heads=H, use_bf16=False))
    out = fwd(x, kv, params)
    jax.block_until_ready(out)

    ref = reference_layer(x, kv, params, heads=H)
    err = float(jnp.max(jnp.abs(out - ref)))

    assert out.shape == (B, Tq, D), out.shape
    assert bool(jnp.all(jnp.isfinite(out)))
    assert err < 5e-2, f"max |pallas - ref| = {err}"
    print("KERNEL_OK")
</pallas_src>

<mosaic_0001>
module attributes {stable_mosaic.version = 11 : i64} {
  func.func @_attn_sublayer_kernel(%arg0: i32, %arg1: memref<1x8x32xf32, #tpu.memory_space<vmem>>, %arg2: memref<1x8x32xf32, #tpu.memory_space<vmem>>, %arg3: memref<1x32xf32, #tpu.memory_space<vmem>>, %arg4: memref<1x32xf32, #tpu.memory_space<vmem>>, %arg5: memref<32x32xf32, #tpu.memory_space<vmem>>, %arg6: memref<1x32xf32, #tpu.memory_space<vmem>>, %arg7: memref<32x64xf32, #tpu.memory_space<vmem>>, %arg8: memref<1x64xf32, #tpu.memory_space<vmem>>, %arg9: memref<32x32xf32, #tpu.memory_space<vmem>>, %arg10: memref<1x32xf32, #tpu.memory_space<vmem>>, %arg11: memref<1x8x32xf32, #tpu.memory_space<vmem>>) attributes {dimension_semantics = [#tpu.dimension_semantics<parallel>], iteration_bounds = array<i64: 2>, scalar_prefetch = 0 : i64, scratch_operands = 0 : i64, tpu.core_type = #tpu.core_type<tc>, window_params = [{transform_indices = @transform_0, window_bounds = array<i64: 1, 8, 32>}, {transform_indices = @transform_1, window_bounds = array<i64: 1, 8, 32>}, {pipeline_mode = #tpu.pipeline_mode<synchronous>, transform_indices = @transform_2, window_bounds = array<i64: 1, 32>}, {pipeline_mode = #tpu.pipeline_mode<synchronous>, transform_indices = @transform_3, window_bounds = array<i64: 1, 32>}, {pipeline_mode = #tpu.pipeline_mode<synchronous>, transform_indices = @transform_4, window_bounds = array<i64: 32, 32>}, {pipeline_mode = #tpu.pipeline_mode<synchronous>, transform_indices = @transform_5, window_bounds = array<i64: 1, 32>}, {pipeline_mode = #tpu.pipeline_mode<synchronous>, transform_indices = @transform_6, window_bounds = array<i64: 32, 64>}, {pipeline_mode = #tpu.pipeline_mode<synchronous>, transform_indices = @transform_7, window_bounds = array<i64: 1, 64>}, {pipeline_mode = #tpu.pipeline_mode<synchronous>, transform_indices = @transform_8, window_bounds = array<i64: 32, 32>}, {pipeline_mode = #tpu.pipeline_mode<synchronous>, transform_indices = @transform_9, window_bounds = array<i64: 1, 32>}, {transform_indices = @transform_10, window_bounds = array<i64: 1, 8, 32>}]} {
    %c0 = arith.constant 0 : index
    %c0_0 = arith.constant 0 : index
    %c0_1 = arith.constant 0 : index
    %0 = vector.load %arg1[%c0, %c0_0, %c0_1] : memref<1x8x32xf32, #tpu.memory_space<vmem>>, vector<1x8x32xf32>
    %1 = vector.shape_cast %0 : vector<1x8x32xf32> to vector<8x32xf32>
    %c0_2 = arith.constant 0 : index
    %c0_3 = arith.constant 0 : index
    %c0_4 = arith.constant 0 : index
    %2 = vector.load %arg2[%c0_2, %c0_3, %c0_4] : memref<1x8x32xf32, #tpu.memory_space<vmem>>, vector<1x8x32xf32>
    %3 = vector.shape_cast %2 : vector<1x8x32xf32> to vector<8x32xf32>
    %c0_5 = arith.constant 0 : index
    %c0_6 = arith.constant 0 : index
    %4 = vector.load %arg3[%c0_5, %c0_6] : memref<1x32xf32, #tpu.memory_space<vmem>>, vector<1x32xf32>
    %c0_7 = arith.constant 0 : index
    %c0_8 = arith.constant 0 : index
    %5 = vector.load %arg4[%c0_7, %c0_8] : memref<1x32xf32, #tpu.memory_space<vmem>>, vector<1x32xf32>
    %cst = arith.constant dense<0.000000e+00> : vector<8xf32>
    %6 = vector.multi_reduction <add>, %1, %cst [1] : vector<8x32xf32> to vector<8xf32>
    %7 = vector.shape_cast %6 : vector<8xf32> to vector<8x1xf32>
    %cst_9 = arith.constant 3.200000e+01 : f32
    %8 = vector.broadcast %cst_9 : f32 to vector<8x1xf32>
    %9 = arith.divf %7, %8 : vector<8x1xf32>
    %10 = vector.broadcast %9 : vector<8x1xf32> to vector<8x32xf32>
    %11 = arith.subf %1, %10 : vector<8x32xf32>
    %12 = arith.mulf %11, %11 : vector<8x32xf32>
    %cst_10 = arith.constant dense<0.000000e+00> : vector<8xf32>
    %13 = vector.multi_reduction <add>, %12, %cst_10 [1] : vector<8x32xf32> to vector<8xf32>
    %14 = vector.shape_cast %13 : vector<8xf32> to vector<8x1xf32>
    %cst_11 = arith.constant 0.0322580636 : f32
    %15 = vector.broadcast %cst_11 : f32 to vector<8x1xf32>
    %16 = arith.mulf %14, %15 : vector<8x1xf32>
    %17 = math.sqrt %16 : vector<8x1xf32>
    %cst_12 = arith.constant 9.99999997E-7 : f32
    %18 = vector.broadcast %cst_12 : f32 to vector<8x1xf32>
    %19 = arith.addf %17, %18 : vector<8x1xf32>
    %20 = tpu.reciprocal %19 {approx = true} : vector<8x1xf32> -> vector<8x1xf32>
    %21 = vector.broadcast %4 : vector<1x32xf32> to vector<8x32xf32>
    %22 = arith.mulf %21, %11 : vector<8x32xf32>
    %23 = vector.broadcast %20 : vector<8x1xf32> to vector<8x32xf32>
    %24 = arith.mulf %22, %23 : vector<8x32xf32>
    %25 = vector.broadcast %5 : vector<1x32xf32> to vector<8x32xf32>
    %26 = arith.addf %24, %25 : vector<8x32xf32>
    %c0_13 = arith.constant 0 : index
    %c0_14 = arith.constant 0 : index
    %27 = vector.load %arg5[%c0_13, %c0_14] : memref<32x32xf32, #tpu.memory_space<vmem>>, vector<32x32xf32>
    %cst_15 = arith.constant dense<0.000000e+00> : vector<8x32xf32>
    %28 = tpu.matmul %26, %27, %cst_15 {dimension_numbers = #tpu.dot_dimension_numbers<[1], [0], [0], [1], [0, 0, 1, 1], [], []>} : vector<8x32xf32>, vector<32x32xf32>, vector<8x32xf32> -> vector<8x32xf32>
    %c0_16 = arith.constant 0 : index
    %c0_17 = arith.constant 0 : index
    %29 = vector.load %arg6[%c0_16, %c0_17] : memref<1x32xf32, #tpu.memory_space<vmem>>, vector<1x32xf32>
    %30 = vector.broadcast %29 : vector<1x32xf32> to vector<8x32xf32>
    %31 = arith.addf %28, %30 : vector<8x32xf32>
    %cst_18 = arith.constant 0.353553385 : f32
    %32 = vector.broadcast %cst_18 : f32 to vector<8x32xf32>
    %33 = arith.mulf %31, %32 : vector<8x32xf32>
    %c0_19 = arith.constant 0 : index
    %c0_20 = arith.constant 0 : index
    %34 = vector.load %arg7[%c0_19, %c0_20] : memref<32x64xf32, #tpu.memory_space<vmem>>, vector<32x64xf32>
    %cst_21 = arith.constant dense<0.000000e+00> : vector<8x64xf32>
    %35 = tpu.matmul %3, %34, %cst_21 {dimension_numbers = #tpu.dot_dimension_numbers<[1], [0], [0], [1], [0, 0, 1, 1], [], []>} : vector<8x32xf32>, vector<32x64xf32>, vector<8x64xf32> -> vector<8x64xf32>
    %c0_22 = arith.constant 0 : index
    %c0_23 = arith.constant 0 : index
    %36 = vector.load %arg8[%c0_22, %c0_23] : memref<1x64xf32, #tpu.memory_space<vmem>>, vector<1x64xf32>
    %37 = vector.broadcast %36 : vector<1x64xf32> to vector<8x64xf32>
    %38 = arith.addf %35, %37 : vector<8x64xf32>
    %39 = vector.extract_strided_slice %38 {offsets = [0, 0], sizes = [8, 32], strides = [1, 1]} : vector<8x64xf32> to vector<8x32xf32>
    %40 = vector.extract_strided_slice %38 {offsets = [0, 32], sizes = [8, 32], strides = [1, 1]} : vector<8x64xf32> to vector<8x32xf32>
    %41 = vector.extract_strided_slice %33 {offsets = [0, 0], sizes = [8, 8], strides = [1, 1]} : vector<8x32xf32> to vector<8x8xf32>
    %42 = vector.extract_strided_slice %39 {offsets = [0, 0], sizes = [8, 8], strides = [1, 1]} : vector<8x32xf32> to vector<8x8xf32>
    %43 = vector.extract_strided_slice %40 {offsets = [0, 0], sizes = [8, 8], strides = [1, 1]} : vector<8x32xf32> to vector<8x8xf32>
    %cst_24 = arith.constant dense<0.000000e+00> : vector<8x8xf32>
    %44 = tpu.matmul %41, %42, %cst_24 {dimension_numbers = #tpu.dot_dimension_numbers<[1], [1], [0], [0], [0, 0, 1, 0], [], []>} : vector<8x8xf32>, vector<8x8xf32>, vector<8x8xf32> -> vector<8x8xf32>
    %cst_25 = arith.constant dense<0xFF800000> : vector<8xf32>
    %45 = vector.multi_reduction <maximumf>, %44, %cst_25 [1] : vector<8x8xf32> to vector<8xf32>
    %46 = vector.shape_cast %45 : vector<8xf32> to vector<8x1xf32>
    %47 = vector.broadcast %46 : vector<8x1xf32> to vector<8x8xf32>
    %48 = arith.subf %44, %47 : vector<8x8xf32>
    %49 = math.exp %48 : vector<8x8xf32>
    %cst_26 = arith.constant dense<0.000000e+00> : vector<8xf32>
    %50 = vector.multi_reduction <add>, %49, %cst_26 [1] : vector<8x8xf32> to vector<8xf32>
    %51 = vector.shape_cast %50 : vector<8xf32> to vector<8x1xf32>
    %52 = tpu.reciprocal %51 {approx = true} : vector<8x1xf32> -> vector<8x1xf32>
    %53 = vector.broadcast %52 : vector<8x1xf32> to vector<8x8xf32>
    %54 = arith.mulf %49, %53 : vector<8x8xf32>
    %cst_27 = arith.constant dense<0.000000e+00> : vector<8x8xf32>
    %55 = tpu.matmul %54, %43, %cst_27 {dimension_numbers = #tpu.dot_dimension_numbers<[1], [0], [0], [1], [0, 0, 1, 1], [], []>} : vector<8x8xf32>, vector<8x8xf32>, vector<8x8xf32> -> vector<8x8xf32>
    %56 = vector.extract_strided_slice %33 {offsets = [0, 8], sizes = [8, 8], strides = [1, 1]} : vector<8x32xf32> to vector<8x8xf32>
    %57 = vector.extract_strided_slice %39 {offsets = [0, 8], sizes = [8, 8], strides = [1, 1]} : vector<8x32xf32> to vector<8x8xf32>
    %58 = vector.extract_strided_slice %40 {offsets = [0, 8], sizes = [8, 8], strides = [1, 1]} : vector<8x32xf32> to vector<8x8xf32>
    %cst_28 = arith.constant dense<0.000000e+00> : vector<8x8xf32>
    %59 = tpu.matmul %56, %57, %cst_28 {dimension_numbers = #tpu.dot_dimension_numbers<[1], [1], [0], [0], [0, 0, 1, 0], [], []>} : vector<8x8xf32>, vector<8x8xf32>, vector<8x8xf32> -> vector<8x8xf32>
    %cst_29 = arith.constant dense<0xFF800000> : vector<8xf32>
    %60 = vector.multi_reduction <maximumf>, %59, %cst_29 [1] : vector<8x8xf32> to vector<8xf32>
    %61 = vector.shape_cast %60 : vector<8xf32> to vector<8x1xf32>
    %62 = vector.broadcast %61 : vector<8x1xf32> to vector<8x8xf32>
    %63 = arith.subf %59, %62 : vector<8x8xf32>
    %64 = math.exp %63 : vector<8x8xf32>
    %cst_30 = arith.constant dense<0.000000e+00> : vector<8xf32>
    %65 = vector.multi_reduction <add>, %64, %cst_30 [1] : vector<8x8xf32> to vector<8xf32>
    %66 = vector.shape_cast %65 : vector<8xf32> to vector<8x1xf32>
    %67 = tpu.reciprocal %66 {approx = true} : vector<8x1xf32> -> vector<8x1xf32>
    %68 = vector.broadcast %67 : vector<8x1xf32> to vector<8x8xf32>
    %69 = arith.mulf %64, %68 : vector<8x8xf32>
    %cst_31 = arith.constant dense<0.000000e+00> : vector<8x8xf32>
    %70 = tpu.matmul %69, %58, %cst_31 {dimension_numbers = #tpu.dot_dimension_numbers<[1], [0], [0], [1], [0, 0, 1, 1], [], []>} : vector<8x8xf32>, vector<8x8xf32>, vector<8x8xf32> -> vector<8x8xf32>
    %71 = vector.extract_strided_slice %33 {offsets = [0, 16], sizes = [8, 8], strides = [1, 1]} : vector<8x32xf32> to vector<8x8xf32>
    %72 = vector.extract_strided_slice %39 {offsets = [0, 16], sizes = [8, 8], strides = [1, 1]} : vector<8x32xf32> to vector<8x8xf32>
    %73 = vector.extract_strided_slice %40 {offsets = [0, 16], sizes = [8, 8], strides = [1, 1]} : vector<8x32xf32> to vector<8x8xf32>
    %cst_32 = arith.constant dense<0.000000e+00> : vector<8x8xf32>
    %74 = tpu.matmul %71, %72, %cst_32 {dimension_numbers = #tpu.dot_dimension_numbers<[1], [1], [0], [0], [0, 0, 1, 0], [], []>} : vector<8x8xf32>, vector<8x8xf32>, vector<8x8xf32> -> vector<8x8xf32>
    %cst_33 = arith.constant dense<0xFF800000> : vector<8xf32>
    %75 = vector.multi_reduction <maximumf>, %74, %cst_33 [1] : vector<8x8xf32> to vector<8xf32>
    %76 = vector.shape_cast %75 : vector<8xf32> to vector<8x1xf32>
    %77 = vector.broadcast %76 : vector<8x1xf32> to vector<8x8xf32>
    %78 = arith.subf %74, %77 : vector<8x8xf32>
    %79 = math.exp %78 : vector<8x8xf32>
    %cst_34 = arith.constant dense<0.000000e+00> : vector<8xf32>
    %80 = vector.multi_reduction <add>, %79, %cst_34 [1] : vector<8x8xf32> to vector<8xf32>
    %81 = vector.shape_cast %80 : vector<8xf32> to vector<8x1xf32>
    %82 = tpu.reciprocal %81 {approx = true} : vector<8x1xf32> -> vector<8x1xf32>
    %83 = vector.broadcast %82 : vector<8x1xf32> to vector<8x8xf32>
    %84 = arith.mulf %79, %83 : vector<8x8xf32>
    %cst_35 = arith.constant dense<0.000000e+00> : vector<8x8xf32>
    %85 = tpu.matmul %84, %73, %cst_35 {dimension_numbers = #tpu.dot_dimension_numbers<[1], [0], [0], [1], [0, 0, 1, 1], [], []>} : vector<8x8xf32>, vector<8x8xf32>, vector<8x8xf32> -> vector<8x8xf32>
    %86 = vector.extract_strided_slice %33 {offsets = [0, 24], sizes = [8, 8], strides = [1, 1]} : vector<8x32xf32> to vector<8x8xf32>
    %87 = vector.extract_strided_slice %39 {offsets = [0, 24], sizes = [8, 8], strides = [1, 1]} : vector<8x32xf32> to vector<8x8xf32>
    %88 = vector.extract_strided_slice %40 {offsets = [0, 24], sizes = [8, 8], strides = [1, 1]} : vector<8x32xf32> to vector<8x8xf32>
    %cst_36 = arith.constant dense<0.000000e+00> : vector<8x8xf32>
    %89 = tpu.matmul %86, %87, %cst_36 {dimension_numbers = #tpu.dot_dimension_numbers<[1], [1], [0], [0], [0, 0, 1, 0], [], []>} : vector<8x8xf32>, vector<8x8xf32>, vector<8x8xf32> -> vector<8x8xf32>
    %cst_37 = arith.constant dense<0xFF800000> : vector<8xf32>
    %90 = vector.multi_reduction <maximumf>, %89, %cst_37 [1] : vector<8x8xf32> to vector<8xf32>
    %91 = vector.shape_cast %90 : vector<8xf32> to vector<8x1xf32>
    %92 = vector.broadcast %91 : vector<8x1xf32> to vector<8x8xf32>
    %93 = arith.subf %89, %92 : vector<8x8xf32>
    %94 = math.exp %93 : vector<8x8xf32>
    %cst_38 = arith.constant dense<0.000000e+00> : vector<8xf32>
    %95 = vector.multi_reduction <add>, %94, %cst_38 [1] : vector<8x8xf32> to vector<8xf32>
    %96 = vector.shape_cast %95 : vector<8xf32> to vector<8x1xf32>
    %97 = tpu.reciprocal %96 {approx = true} : vector<8x1xf32> -> vector<8x1xf32>
    %98 = vector.broadcast %97 : vector<8x1xf32> to vector<8x8xf32>
    %99 = arith.mulf %94, %98 : vector<8x8xf32>
    %cst_39 = arith.constant dense<0.000000e+00> : vector<8x8xf32>
    %100 = tpu.matmul %99, %88, %cst_39 {dimension_numbers = #tpu.dot_dimension_numbers<[1], [0], [0], [1], [0, 0, 1, 1], [], []>} : vector<8x8xf32>, vector<8x8xf32>, vector<8x8xf32> -> vector<8x8xf32>
    %101 = tpu.concatenate %55, %70, %85, %100 in 1 : vector<8x8xf32>, vector<8x8xf32>, vector<8x8xf32>, vector<8x8xf32> -> vector<8x32xf32>
    %c0_40 = arith.constant 0 : index
    %c0_41 = arith.constant 0 : index
    %102 = vector.load %arg9[%c0_40, %c0_41] : memref<32x32xf32, #tpu.memory_space<vmem>>, vector<32x32xf32>
    %cst_42 = arith.constant dense<0.000000e+00> : vector<8x32xf32>
    %103 = tpu.matmul %101, %102, %cst_42 {dimension_numbers = #tpu.dot_dimension_numbers<[1], [0], [0], [1], [0, 0, 1, 1], [], []>} : vector<8x32xf32>, vector<32x32xf32>, vector<8x32xf32> -> vector<8x32xf32>
    %c0_43 = arith.constant 0 : index
    %c0_44 = arith.constant 0 : index
    %104 = vector.load %arg10[%c0_43, %c0_44] : memref<1x32xf32, #tpu.memory_space<vmem>>, vector<1x32xf32>
    %105 = vector.broadcast %104 : vector<1x32xf32> to vector<8x32xf32>
    %106 = arith.addf %103, %105 : vector<8x32xf32>
    %107 = arith.addf %1, %106 : vector<8x32xf32>
    %c0_45 = arith.constant 0 : index
    %c0_46 = arith.constant 0 : index
    %c0_47 = arith.constant 0 : index
    %108 = vector.load %arg11[%c0_45, %c0_46, %c0_47] : memref<1x8x32xf32, #tpu.memory_space<vmem>>, vector<1x8x32xf32>
    %109 = vector.shape_cast %108 : vector<1x8x32xf32> to vector<8x32xf32>
    %110 = vector.shape_cast %107 : vector<8x32xf32> to vector<1x8x32xf32>
    tpu.vector_store %arg11[%c0_45, %c0_46, %c0_47], %110 {strides = array<i32>} : memref<1x8x32xf32, #tpu.memory_space<vmem>>, vector<1x8x32xf32>,
    return
  }
  func.func @transform_0(%arg0: i32) -> (i32, i32, i32) {
    %c0_i32 = arith.constant 0 : i32
    %c0_i32_0 = arith.constant 0 : i32
    %c0_i32_1 = arith.constant 0 : i32
    return %arg0, %c0_i32, %c0_i32_0 : i32, i32, i32
  }
  func.func @transform_1(%arg0: i32) -> (i32, i32, i32) {
    %c0_i32 = arith.constant 0 : i32
    %c0_i32_0 = arith.constant 0 : i32
    %c0_i32_1 = arith.constant 0 : i32
    return %arg0, %c0_i32, %c0_i32_0 : i32, i32, i32
  }
  func.func @transform_2(%arg0: i32) -> (i32, i32) {
    %c0_i32 = arith.constant 0 : i32
    %c0_i32_0 = arith.constant 0 : i32
    %c0_i32_1 = arith.constant 0 : i32
    return %c0_i32, %c0_i32_0 : i32, i32
  }
  func.func @transform_3(%arg0: i32) -> (i32, i32) {
    %c0_i32 = arith.constant 0 : i32
    %c0_i32_0 = arith.constant 0 : i32
    %c0_i32_1 = arith.constant 0 : i32
    return %c0_i32, %c0_i32_0 : i32, i32
  }
  func.func @transform_4(%arg0: i32) -> (i32, i32) {
    %c0_i32 = arith.constant 0 : i32
    %c0_i32_0 = arith.constant 0 : i32
    %c0_i32_1 = arith.constant 0 : i32
    return %c0_i32, %c0_i32_0 : i32, i32
  }
  func.func @transform_5(%arg0: i32) -> (i32, i32) {
    %c0_i32 = arith.constant 0 : i32
    %c0_i32_0 = arith.constant 0 : i32
    %c0_i32_1 = arith.constant 0 : i32
    return %c0_i32, %c0_i32_0 : i32, i32
  }
  func.func @transform_6(%arg0: i32) -> (i32, i32) {
    %c0_i32 = arith.constant 0 : i32
    %c0_i32_0 = arith.constant 0 : i32
    %c0_i32_1 = arith.constant 0 : i32
    return %c0_i32, %c0_i32_0 : i32, i32
  }
  func.func @transform_7(%arg0: i32) -> (i32, i32) {
    %c0_i32 = arith.constant 0 : i32
    %c0_i32_0 = arith.constant 0 : i32
    %c0_i32_1 = arith.constant 0 : i32
    return %c0_i32, %c0_i32_0 : i32, i32
  }
  func.func @transform_8(%arg0: i32) -> (i32, i32) {
    %c0_i32 = arith.constant 0 : i32
    %c0_i32_0 = arith.constant 0 : i32
    %c0_i32_1 = arith.constant 0 : i32
    return %c0_i32, %c0_i32_0 : i32, i32
  }
  func.func @transform_9(%arg0: i32) -> (i32, i32) {
    %c0_i32 = arith.constant 0 : i32
    %c0_i32_0 = arith.constant 0 : i32
    %c0_i32_1 = arith.constant 0 : i32
    return %c0_i32, %c0_i32_0 : i32, i32
  }
  func.func @transform_10(%arg0: i32) -> (i32, i32, i32) {
    %c0_i32 = arith.constant 0 : i32
    %c0_i32_0 = arith.constant 0 : i32
    %c0_i32_1 = arith.constant 0 : i32
    return %arg0, %c0_i32, %c0_i32_0 : i32, i32, i32
  }
}

module attributes {stable_mosaic.version = 11 : i64} {
  func.func @_ffn_sublayer_kernel(%arg0: i32, %arg1: memref<16x32xf32, #tpu.memory_space<vmem>>, %arg2: memref<1x32xf32, #tpu.memory_space<vmem>>, %arg3: memref<1x32xf32, #tpu.memory_space<vmem>>, %arg4: memref<32x64xf32, #tpu.memory_space<vmem>>, %arg5: memref<1x64xf32, #tpu.memory_space<vmem>>, %arg6: memref<64x32xf32, #tpu.memory_space<vmem>>, %arg7: memref<1x32xf32, #tpu.memory_space<vmem>>, %arg8: memref<16x32xf32, #tpu.memory_space<vmem>>) attributes {dimension_semantics = [#tpu.dimension_semantics<parallel>], iteration_bounds = array<i64: 1>, scalar_prefetch = 0 : i64, scratch_operands = 0 : i64, tpu.core_type = #tpu.core_type<tc>, window_params = [{transform_indices = @transform_0, window_bounds = array<i64: 16, 32>}, {pipeline_mode = #tpu.pipeline_mode<synchronous>, transform_indices = @transform_1, window_bounds = array<i64: 1, 32>}, {pipeline_mode = #tpu.pipeline_mode<synchronous>, transform_indices = @transform_2, window_bounds = array<i64: 1, 32>}, {pipeline_mode = #tpu.pipeline_mode<synchronous>, transform_indices = @transform_3, window_bounds = array<i64: 32, 64>}, {pipeline_mode = #tpu.pipeline_mode<synchronous>, transform_indices = @transform_4, window_bounds = array<i64: 1, 64>}, {pipeline_mode = #tpu.pipeline_mode<synchronous>, transform_indices = @transform_5, window_bounds = array<i64: 64, 32>}, {pipeline_mode = #tpu.pipeline_mode<synchronous>, transform_indices = @transform_6, window_bounds = array<i64: 1, 32>}, {transform_indices = @transform_7, window_bounds = array<i64: 16, 32>}]} {
    %c0 = arith.constant 0 : index
    %c0_0 = arith.constant 0 : index
    %0 = vector.load %arg1[%c0, %c0_0] : memref<16x32xf32, #tpu.memory_space<vmem>>, vector<16x32xf32>
    %c0_1 = arith.constant 0 : index
    %c0_2 = arith.constant 0 : index
    %1 = vector.load %arg2[%c0_1, %c0_2] : memref<1x32xf32, #tpu.memory_space<vmem>>, vector<1x32xf32>
    %c0_3 = arith.constant 0 : index
    %c0_4 = arith.constant 0 : index
    %2 = vector.load %arg3[%c0_3, %c0_4] : memref<1x32xf32, #tpu.memory_space<vmem>>, vector<1x32xf32>
    %cst = arith.constant dense<0.000000e+00> : vector<16xf32>
    %3 = vector.multi_reduction <add>, %0, %cst [1] : vector<16x32xf32> to vector<16xf32>
    %4 = vector.shape_cast %3 : vector<16xf32> to vector<16x1xf32>
    %cst_5 = arith.constant 3.200000e+01 : f32
    %5 = vector.broadcast %cst_5 : f32 to vector<16x1xf32>
    %6 = arith.divf %4, %5 : vector<16x1xf32>
    %7 = vector.broadcast %6 : vector<16x1xf32> to vector<16x32xf32>
    %8 = arith.subf %0, %7 : vector<16x32xf32>
    %9 = arith.mulf %8, %8 : vector<16x32xf32>
    %cst_6 = arith.constant dense<0.000000e+00> : vector<16xf32>
    %10 = vector.multi_reduction <add>, %9, %cst_6 [1] : vector<16x32xf32> to vector<16xf32>
    %11 = vector.shape_cast %10 : vector<16xf32> to vector<16x1xf32>
    %cst_7 = arith.constant 0.0322580636 : f32
    %12 = vector.broadcast %cst_7 : f32 to vector<16x1xf32>
    %13 = arith.mulf %11, %12 : vector<16x1xf32>
    %14 = math.sqrt %13 : vector<16x1xf32>
    %cst_8 = arith.constant 9.99999997E-7 : f32
    %15 = vector.broadcast %cst_8 : f32 to vector<16x1xf32>
    %16 = arith.addf %14, %15 : vector<16x1xf32>
    %17 = tpu.reciprocal %16 {approx = true} : vector<16x1xf32> -> vector<16x1xf32>
    %18 = vector.broadcast %1 : vector<1x32xf32> to vector<16x32xf32>
    %19 = arith.mulf %18, %8 : vector<16x32xf32>
    %20 = vector.broadcast %17 : vector<16x1xf32> to vector<16x32xf32>
    %21 = arith.mulf %19, %20 : vector<16x32xf32>
    %22 = vector.broadcast %2 : vector<1x32xf32> to vector<16x32xf32>
    %23 = arith.addf %21, %22 : vector<16x32xf32>
    %c0_9 = arith.constant 0 : index
    %c0_10 = arith.constant 0 : index
    %24 = vector.load %arg4[%c0_9, %c0_10] : memref<32x64xf32, #tpu.memory_space<vmem>>, vector<32x64xf32>
    %cst_11 = arith.constant dense<0.000000e+00> : vector<16x64xf32>
    %25 = tpu.matmul %23, %24, %cst_11 {dimension_numbers = #tpu.dot_dimension_numbers<[1], [0], [0], [1], [0, 0, 1, 1], [], []>} : vector<16x32xf32>, vector<32x64xf32>, vector<16x64xf32> -> vector<16x64xf32>
    %c0_12 = arith.constant 0 : index
    %c0_13 = arith.constant 0 : index
    %26 = vector.load %arg5[%c0_12, %c0_13] : memref<1x64xf32, #tpu.memory_space<vmem>>, vector<1x64xf32>
    %27 = vector.broadcast %26 : vector<1x64xf32> to vector<16x64xf32>
    %28 = arith.addf %25, %27 : vector<16x64xf32>
    %cst_14 = arith.constant 0.000000e+00 : f32
    %29 = vector.broadcast %cst_14 : f32 to vector<16x64xf32>
    %30 = arith.maximumf %28, %29 : vector<16x64xf32>
    %c0_15 = arith.constant 0 : index
    %c0_16 = arith.constant 0 : index
    %31 = vector.load %arg6[%c0_15, %c0_16] : memref<64x32xf32, #tpu.memory_space<vmem>>, vector<64x32xf32>
    %cst_17 = arith.constant dense<0.000000e+00> : vector<16x32xf32>
    %32 = tpu.matmul %30, %31, %cst_17 {dimension_numbers = #tpu.dot_dimension_numbers<[1], [0], [0], [1], [0, 0, 1, 1], [], []>} : vector<16x64xf32>, vector<64x32xf32>, vector<16x32xf32> -> vector<16x32xf32>
    %c0_18 = arith.constant 0 : index
    %c0_19 = arith.constant 0 : index
    %33 = vector.load %arg7[%c0_18, %c0_19] : memref<1x32xf32, #tpu.memory_space<vmem>>, vector<1x32xf32>
    %34 = vector.broadcast %33 : vector<1x32xf32> to vector<16x32xf32>
    %35 = arith.addf %32, %34 : vector<16x32xf32>
    %36 = arith.addf %0, %35 : vector<16x32xf32>
    %c0_20 = arith.constant 0 : index
    %c0_21 = arith.constant 0 : index
    %37 = vector.load %arg8[%c0_20, %c0_21] : memref<16x32xf32, #tpu.memory_space<vmem>>, vector<16x32xf32>
    tpu.vector_store %arg8[%c0_20, %c0_21], %36 {strides = array<i32>} : memref<16x32xf32, #tpu.memory_space<vmem>>, vector<16x32xf32>,
    return
  }
  func.func @transform_0(%arg0: i32) -> (i32, i32) {
    %c0_i32 = arith.constant 0 : i32
    %c0_i32_0 = arith.constant 0 : i32
    return %arg0, %c0_i32 : i32, i32
  }
  func.func @transform_1(%arg0: i32) -> (i32, i32) {
    %c0_i32 = arith.constant 0 : i32
    %c0_i32_0 = arith.constant 0 : i32
    %c0_i32_1 = arith.constant 0 : i32
    return %c0_i32, %c0_i32_0 : i32, i32
  }
  func.func @transform_2(%arg0: i32) -> (i32, i32) {
    %c0_i32 = arith.constant 0 : i32
    %c0_i32_0 = arith.constant 0 : i32
    %c0_i32_1 = arith.constant 0 : i32
    return %c0_i32, %c0_i32_0 : i32, i32
  }
  func.func @transform_3(%arg0: i32) -> (i32, i32) {
    %c0_i32 = arith.constant 0 : i32
    %c0_i32_0 = arith.constant 0 : i32
    %c0_i32_1 = arith.constant 0 : i32
    return %c0_i32, %c0_i32_0 : i32, i32
  }
  func.func @transform_4(%arg0: i32) -> (i32, i32) {
    %c0_i32 = arith.constant 0 : i32
    %c0_i32_0 = arith.constant 0 : i32
    %c0_i32_1 = arith.constant 0 : i32
    return %c0_i32, %c0_i32_0 : i32, i32
  }
  func.func @transform_5(%arg0: i32) -> (i32, i32) {
    %c0_i32 = arith.constant 0 : i32
    %c0_i32_0 = arith.constant 0 : i32
    %c0_i32_1 = arith.constant 0 : i32
    return %c0_i32, %c0_i32_0 : i32, i32
  }
  func.func @transform_6(%arg0: i32) -> (i32, i32) {
    %c0_i32 = arith.constant 0 : i32
    %c0_i32_0 = arith.constant 0 : i32
    %c0_i32_1 = arith.constant 0 : i32
    return %c0_i32, %c0_i32_0 : i32, i32
  }
  func.func @transform_7(%arg0: i32) -> (i32, i32) {
    %c0_i32 = arith.constant 0 : i32
    %c0_i32_0 = arith.constant 0 : i32
    return %arg0, %c0_i32 : i32, i32
  }
}

</mosaic_0001>

<llo_original>
// kernel: cross_attention_encoder_layer.3
$region0: #{cross_attention_encoder_layer.3}
  #allocation0 [shape = 'u32[]', space=smem, size = 0x4, offset = 0x4, fixed_abs, tag = 'smem constant byte address 0x4 - core index']
  #allocation1 [shape = 'u32[144,128]{1,0:T(1,128)}', space=vmem, size = 0x12000, scoped, tag = 'internal scratch']
  %s0 = inlined_call_operand.vmem [shape: f32[16,32], index: 0, kind: input, shape index: {}]
  %s1 = inlined_call_operand.vmem [shape: f32[1,32], index: 1, kind: input, shape index: {}]
  %s2 = inlined_call_operand.vmem [shape: f32[1,32], index: 2, kind: input, shape index: {}]
  %s3 = inlined_call_operand.vmem [shape: f32[32,64], index: 3, kind: input, shape index: {}]
  %s4 = inlined_call_operand.vmem [shape: f32[1,64], index: 4, kind: input, shape index: {}]
  %s5 = inlined_call_operand.vmem [shape: f32[64,32], index: 5, kind: input, shape index: {}]
  %s6 = inlined_call_operand.vmem [shape: f32[1,32], index: 6, kind: input, shape index: {}]
  %s7 = inlined_call_operand.hbm [shape: f32[16,32], index: 7, kind: output, shape index: {}]
  %s8 = sld [smem:[#allocation0]]
  $region38: #{cross_attention_encoder_layer.3} parent=0
    _
  %s10 = ssub.s32 1, %s8
  %s11 = scalar_select 0, %s10, %s8
  $region1: #{cross_attention_encoder_layer.3} parent=0
    #allocation2 [shape = 'u8[8192]{0}', space=vmem, size = 0x2000, scoped, tag = 'output window, operand 0, single buffered']
    #allocation3 [shape = 's32[1]{0}', space=sflag, size = 0x4, scoped, tag = 'scoped memory for cross_attention_encoder_layer.3']
    %12 = vsyncpa [#allocation3], 0
    // Predicated region
    $region2: #{cross_attention_encoder_layer.3} parent=1 // pred_check
      _
    $region3: #{cross_attention_encoder_layer.3} parent=1 // pred_check_branch
      %14 = sbr.rel (0) target = $region5
    $region4: #{cross_attention_encoder_layer.3} parent=1 // pred_region
      _
    $region5: #{cross_attention_encoder_layer.3} parent=1 // pred_fallthru
      _
    // Predicated region
    $region6: #{cross_attention_encoder_layer.3} parent=1 // pred_check
      _
    $region7: #{cross_attention_encoder_layer.3} parent=1 // pred_check_branch
      %16 = sbr.rel (0) target = $region9
    $region8: #{cross_attention_encoder_layer.3} parent=1 // pred_region
      _
    $region9: #{cross_attention_encoder_layer.3} parent=1 // pred_fallthru
      _
    // Predicated region
    $region10: #{cross_attention_encoder_layer.3} parent=1 // pred_check
      _
    $region11: #{cross_attention_encoder_layer.3} parent=1 // pred_check_branch
      %18 = sbr.rel (0) target = $region13
    $region12: #{cross_attention_encoder_layer.3} parent=1 // pred_region
      _
    $region13: #{cross_attention_encoder_layer.3} parent=1 // pred_fallthru
      _
    // Predicated region
    $region14: #{cross_attention_encoder_layer.3} parent=1 // pred_check
      _
    $region15: #{cross_attention_encoder_layer.3} parent=1 // pred_check_branch
      %20 = sbr.rel (0) target = $region17
    $region16: #{cross_attention_encoder_layer.3} parent=1 // pred_region
      _
    $region17: #{cross_attention_encoder_layer.3} parent=1 // pred_fallthru
      _
    // Predicated region
    $region18: #{cross_attention_encoder_layer.3} parent=1 // pred_check
      _
    $region19: #{cross_attention_encoder_layer.3} parent=1 // pred_check_branch
      %22 = sbr.rel (0) target = $region21
    $region20: #{cross_attention_encoder_layer.3} parent=1 // pred_region
      _
    $region21: #{cross_attention_encoder_layer.3} parent=1 // pred_fallthru
      _
    // Predicated region
    $region22: #{cross_attention_encoder_layer.3} parent=1 // pred_check
      _
    $region23: #{cross_attention_encoder_layer.3} parent=1 // pred_check_branch
      %24 = sbr.rel (0) target = $region25
    $region24: #{cross_attention_encoder_layer.3} parent=1 // pred_region
      _
    $region25: #{cross_attention_encoder_layer.3} parent=1 // pred_fallthru
      _
    // Predicated region
    $region26: #{cross_attention_encoder_layer.3} parent=1 // pred_check
      _
    $region27: #{cross_attention_encoder_layer.3} parent=1 // pred_check_branch
      %26 = sbr.rel (0) target = $region29
    $region28: #{cross_attention_encoder_layer.3} parent=1 // pred_region
      _
    $region29: #{cross_attention_encoder_layer.3} parent=1 // pred_fallthru
      _
    %v27 = vld [vmem:[%s0] sm:$0xff]
    %v28 = vld [vmem:[%s0 + $0x8] sm:$0xff]
    %v29 = vld [vmem:[%s1] sm:$0x1]
    %v30 = vld [vmem:[%s2] sm:$0x1]
    %vm31 = vcmask 261120
    %v32 = vsel %vm31, %v27, 0.0
    %33 = vadd.xlane.f32.xlu0 %v32
    %v34 = vpop.xlane.xlu0 %33
    %v35 = vsel %vm31, %v28, 0.0
    %36 = vadd.xlane.f32.xlu0 %v35
    %v37 = vpop.xlane.xlu0 %36
    %v38 = vrcp.pop 32.0
    %v39 = vmul.f32 %v34, %v38
    %v40 = vmul.f32 %v37, %v38
    %v41 = vsub.f32 %v27, %v39
    %v42 = vsub.f32 %v28, %v40
    %v43 = vmul.f32 %v41, %v41
    %v44 = vmul.f32 %v42, %v42
    %v45 = vsel %vm31, %v43, 0.0
    %46 = vadd.xlane.f32.xlu0 %v45
    %v47 = vpop.xlane.xlu0 %46
    %v48 = vsel %vm31, %v44, 0.0
    %49 = vadd.xlane.f32.xlu0 %v48
    %v50 = vpop.xlane.xlu0 %49
    %v51 = vmul.f32 %v47, 0.032258064
    %v52 = vmul.f32 %v50, 0.032258064
    %v53 = vrsqrt.pop %v51
    %v54 = vmul.f32 %v51, %v53
    %vm55 = vcmp.eq.f32.partialorder %v51, inf
    %v56 = vsel %vm55, %v51, %v54
    %vm57 = vcmp.eq.f32.partialorder %v51, 0.0
    %v58 = vand.u32 %v51, 2147483648
    %v59 = vsel %vm57, %v58, %v56
    %v60 = vrsqrt.pop %v52
    %v61 = vmul.f32 %v52, %v60
    %vm62 = vcmp.eq.f32.partialorder %v52, inf
    %v63 = vsel %vm62, %v52, %v61
    %vm64 = vcmp.eq.f32.partialorder %v52, 0.0
    %v65 = vand.u32 %v52, 2147483648
    %v66 = vsel %vm64, %v65, %v63
    %v67 = vadd.f32 %v59, 1e-06
    %v68 = vadd.f32 %v66, 1e-06
    %v69 = vrcp.pop %v67
    %v70 = vrcp.pop %v68
    %v72 = vlaneseq
    %v73 = vshrl.u32 %v72, 7
    %v74 = vsub.s32 0, %v73
    %v75 = vrot.slane %v29, %v74
    %v77 = vmul.f32 %v75, %v41
    %v78 = vmul.f32 %v75, %v42
    %v79 = vmul.f32 %v77, %v69
    %v80 = vmul.f32 %v78, %v70
    %v82 = vlaneseq
    %v83 = vshrl.u32 %v82, 7
    %v84 = vsub.s32 0, %v83
    %v85 = vrot.slane %v30, %v84
    %v87 = vadd.f32 %v79, %v85
    %v88 = vadd.f32 %v80, %v85
    %v89 = vld [vmem:[%s3] sm:$0xff]
    %v90 = vld [vmem:[%s3 + $0x8] sm:$0xff]
    %v91 = vld [vmem:[%s3 + $0x10] sm:$0xff]
    %v92 = vld [vmem:[%s3 + $0x18] sm:$0xff]
    %v93 = vld [vmem:[%s4] sm:$0x1]
    %v95 = vlaneseq
    %v96 = vshrl.u32 %v95, 7
    %v97 = vsub.s32 0, %v96
    %v98 = vrot.slane %v93, %v97
    %v101 = vsel %vm31, %v87, 0
    %v104 = vsel %vm31, %v88, 0
    %106 = vmatprep.subr.mxu0 0.0
    %107 = vmatpush1.msra.mxu0 %v89
    %108 = vmatprep.subr.mxu0 0.0
    %109 = vmatpush1.msra.mxu0 %v90
    %110 = vmatprep.subr.mxu0 0.0
    %111 = vmatpush1.msra.mxu0 %v91
    %112 = vmatprep.subr.mxu0 0.0
    %113 = vmatpush1.msra.mxu0 %v92
    %114 = vmatprep.subr.mxu0 0.0
    %115 = vmatpush1.msra.mxu0 0.0
    %116 = vmatprep.subr.mxu0 0.0
    %117 = vmatpush1.msra.mxu0 0.0
    %118 = vmatprep.subr.mxu0 0.0
    %119 = vmatpush1.msra.mxu0 0.0
    %120 = vmatprep.subr.mxu0 0.0
    %121 = vmatpush1.msra.mxu0 0.0
    %122 = vmatprep.subr.mxu0 0.0
    %123 = vmatpush1.msra.mxu0 0.0
    %124 = vmatprep.subr.mxu0 0.0
    %125 = vmatpush1.msra.mxu0 0.0
    %126 = vmatprep.subr.mxu0 0.0
    %127 = vmatpush1.msra.mxu0 0.0
    %128 = vmatprep.subr.mxu0 0.0
    %129 = vmatpush1.msra.mxu0 0.0
    %130 = vmatprep.subr.mxu0 0.0
    %131 = vmatpush1.msra.mxu0 0.0
    %132 = vmatprep.subr.mxu0 0.0
    %133 = vmatpush1.msra.mxu0 0.0
    %134 = vmatprep.subr.mxu0 0.0
    %135 = vmatpush1.msra.mxu0 0.0
    %136 = vmatprep.subr.mxu0 0.0
    %137 = vmatpush1.msra.mxu0 0.0
    %138 = vmatprep.subr.mxu0 0.0
    %139 = vmatpush1.msra.mxu0 0.0
    %140 = vmatprep.subr.mxu0 0.0
    %141 = vmatpush1.msra.mxu0 0.0
    %142 = vmatprep.subr.mxu0 0.0
    %143 = vmatpush1.msra.mxu0 0.0
    %144 = vmatprep.subr.mxu0 0.0
    %145 = vmatpush1.msra.mxu0 0.0
    %146 = vmatprep.subr.mxu0 0.0
    %147 = vmatpush1.msra.mxu0 0.0
    %148 = vmatprep.subr.mxu0 0.0
    %149 = vmatpush1.msra.mxu0 0.0
    %150 = vmatprep.subr.mxu0 0.0
    %151 = vmatpush1.msra.mxu0 0.0
    %152 = vmatprep.subr.mxu0 0.0
    %153 = vmatpush1.msra.mxu0 0.0
    %154 = vmatprep.subr.mxu0 0.0
    %155 = vmatpush1.msra.mxu0 0.0
    %156 = vmatprep.subr.mxu0 0.0
    %157 = vmatpush1.msra.mxu0 0.0
    %158 = vmatprep.subr.mxu0 0.0
    %159 = vmatpush1.msra.mxu0 0.0
    %160 = vmatprep.subr.mxu0 0.0
    %161 = vmatpush1.msra.mxu0 0.0
    %162 = vmatprep.subr.mxu0 0.0
    %163 = vmatpush1.msra.mxu0 0.0
    %164 = vmatprep.subr.mxu0 0.0
    %165 = vmatpush1.msra.mxu0 0.0
    %166 = vmatprep.subr.mxu0 0.0
    %167 = vmatpush1.msra.mxu0 0.0
    %168 = vmatprep.subr.mxu0 0.0
    %169 = vmatpush1.msra.mxu0 0.0
    %170 = vmatprep.mubr.f32.mxu0 0.0
    %171 = vmatmul.mubr.f32.gmra.mrb[0].mxu0 %v101
    %v172 = vpop.f32.mrb[0].mxu0
    %v173 = vadd.f32 %v98, %v172
    %v174 = vpop.f32.mrb[0].mxu0
    %175 = vmatprep.mubr.f32.mxu0 0.0
    %176 = vmatmul.mubr.f32.gmra.mrb[0].mxu0 %v104
    %v177 = vpop.f32.mrb[0].mxu0
    %v178 = vadd.f32 %v98, %v177
    %v179 = vpop.f32.mrb[0].mxu0
    %180 = vdwg.mxu0
    %v181 = vmax.f32 %v173, 0.0
    %v182 = vmax.f32 %v178, 0.0
    %v183 = vld [vmem:[%s5] sm:$0xff]
    %v184 = vld [vmem:[%s5 + $0x8] sm:$0xff]
    %v185 = vld [vmem:[%s5 + $0x10] sm:$0xff]
    %v186 = vld [vmem:[%s5 + $0x18] sm:$0xff]
    %v187 = vld [vmem:[%s5 + $0x20] sm:$0xff]
    %v188 = vld [vmem:[%s5 + $0x28] sm:$0xff]
    %v189 = vld [vmem:[%s5 + $0x30] sm:$0xff]
    %v190 = vld [vmem:[%s5 + $0x38] sm:$0xff]
    %v191 = vld [vmem:[%s6] sm:$0x1]
    %v193 = vlaneseq
    %v194 = vshrl.u32 %v193, 7
    %v195 = vsub.s32 0, %v194
    %v196 = vrot.slane %v191, %v195
    %vm198 = vcmask 523264
    %v200 = vsel %vm198, %v181, 0
    %v203 = vsel %vm198, %v182, 0
    %205 = vmatprep.subr.mxu0 0.0
    %206 = vmatpush1.msra.mxu0 %v183
    %207 = vmatprep.subr.mxu0 0.0
    %208 = vmatpush1.msra.mxu0 %v184
    %209 = vmatprep.subr.mxu0 0.0
    %210 = vmatpush1.msra.mxu0 %v185
    %211 = vmatprep.subr.mxu0 0.0
    %212 = vmatpush1.msra.mxu0 %v186
    %213 = vmatprep.subr.mxu0 0.0
    %214 = vmatpush1.msra.mxu0 %v187
    %215 = vmatprep.subr.mxu0 0.0
    %216 = vmatpush1.msra.mxu0 %v188
    %217 = vmatprep.subr.mxu0 0.0
    %218 = vmatpush1.msra.mxu0 %v189
    %219 = vmatprep.subr.mxu0 0.0
    %220 = vmatpush1.msra.mxu0 %v190
    %221 = vmatprep.subr.mxu0 0.0
    %222 = vmatpush1.msra.mxu0 0.0
    %223 = vmatprep.subr.mxu0 0.0
    %224 = vmatpush1.msra.mxu0 0.0
    %225 = vmatprep.subr.mxu0 0.0
    %226 = vmatpush1.msra.mxu0 0.0
    %227 = vmatprep.subr.mxu0 0.0
    %228 = vmatpush1.msra.mxu0 0.0
    %229 = vmatprep.subr.mxu0 0.0
    %230 = vmatpush1.msra.mxu0 0.0
    %231 = vmatprep.subr.mxu0 0.0
    %232 = vmatpush1.msra.mxu0 0.0
    %233 = vmatprep.subr.mxu0 0.0
    %234 = vmatpush1.msra.mxu0 0.0
    %235 = vmatprep.subr.mxu0 0.0
    %236 = vmatpush1.msra.mxu0 0.0
    %237 = vmatprep.subr.mxu0 0.0
    %238 = vmatpush1.msra.mxu0 0.0
    %239 = vmatprep.subr.mxu0 0.0
    %240 = vmatpush1.msra.mxu0 0.0
    %241 = vmatprep.subr.mxu0 0.0
    %242 = vmatpush1.msra.mxu0 0.0
    %243 = vmatprep.subr.mxu0 0.0
    %244 = vmatpush1.msra.mxu0 0.0
    %245 = vmatprep.subr.mxu0 0.0
    %246 = vmatpush1.msra.mxu0 0.0
    %247 = vmatprep.subr.mxu0 0.0
    %248 = vmatpush1.msra.mxu0 0.0
    %249 = vmatprep.subr.mxu0 0.0
    %250 = vmatpush1.msra.mxu0 0.0
    %251 = vmatprep.subr.mxu0 0.0
    %252 = vmatpush1.msra.mxu0 0.0
    %253 = vmatprep.subr.mxu0 0.0
    %254 = vmatpush1.msra.mxu0 0.0
    %255 = vmatprep.subr.mxu0 0.0
    %256 = vmatpush1.msra.mxu0 0.0
    %257 = vmatprep.subr.mxu0 0.0
    %258 = vmatpush1.msra.mxu0 0.0
    %259 = vmatprep.subr.mxu0 0.0
    %260 = vmatpush1.msra.mxu0 0.0
    %261 = vmatprep.subr.mxu0 0.0
    %262 = vmatpush1.msra.mxu0 0.0
    %263 = vmatprep.subr.mxu0 0.0
    %264 = vmatpush1.msra.mxu0 0.0
    %265 = vmatprep.subr.mxu0 0.0
    %266 = vmatpush1.msra.mxu0 0.0
    %267 = vmatprep.subr.mxu0 0.0
    %268 = vmatpush1.msra.mxu0 0.0
    %269 = vmatprep.mubr.f32.mxu0 0.0
    %270 = vmatmul.mubr.f32.gmra.mrb[0].mxu0 %v200
    %v271 = vpop.f32.mrb[0].mxu0
    %v272 = vadd.f32 %v196, %v271
    %v273 = vpop.f32.mrb[0].mxu0
    %274 = vmatprep.mubr.f32.mxu0 0.0
    %275 = vmatmul.mubr.f32.gmra.mrb[0].mxu0 %v203
    %v276 = vpop.f32.mrb[0].mxu0
    %v277 = vadd.f32 %v196, %v276
    %v278 = vpop.f32.mrb[0].mxu0
    %279 = vdwg.mxu0
    %v280 = vadd.f32 %v27, %v272
    %v281 = vadd.f32 %v28, %v277
    %282 = vst.msk [vmem:[#allocation2] sm:$0xff] %vm31, %v280
    %283 = vst.msk [vmem:[#allocation2 + $0x8] sm:$0xff] %vm31, %v281
    // Predicated region
    $region30: #{cross_attention_encoder_layer.3} parent=1 // pred_check
      _
    $region31: #{cross_attention_encoder_layer.3} parent=1 // pred_check_branch
      %285 = sbr.rel (0) target = $region33
    $region32: #{cross_attention_encoder_layer.3} parent=1 // pred_region
      %s287 = ssub.s32 256, 256
      %288 = vsyncadd [#allocation3], %s287
      %s289 = sshll.u32 [#allocation2], 4
      %s290 = int_to_ptr.vmem [resolvable:$true] %s289
      %295 = dma.vmem_to_hbm [thread:$0]  %s290, 256, %s7, [#allocation3], 128, 128, 8
    $region33: #{cross_attention_encoder_layer.3} parent=1 // pred_fallthru
      _
    // Predicated region
    $region34: #{cross_attention_encoder_layer.3} parent=1 // pred_check
      _
    $region35: #{cross_attention_encoder_layer.3} parent=1 // pred_check_branch
      %297 = sbr.rel (0) target = $region37
    $region36: #{cross_attention_encoder_layer.3} parent=1 // pred_region
      %298 = dma.done [#allocation3], 256
    $region37: #{cross_attention_encoder_layer.3} parent=1 // pred_fallthru
      _
    %299 = vsyncpa [#allocation3], 1

// kernel: cross_attention_encoder_layer.2
$region0: #{cross_attention_encoder_layer.2}
  #allocation0 [shape = 'u32[]', space=smem, size = 0x4, offset = 0x4, fixed_abs, tag = 'smem constant byte address 0x4 - core index']
  #allocation1 [shape = 'u32[144,128]{1,0:T(1,128)}', space=vmem, size = 0x12000, scoped, tag = 'internal scratch']
  %s0 = inlined_call_operand.vmem [shape: f32[2,8,32], index: 0, kind: input, shape index: {}]
  %s1 = inlined_call_operand.vmem [shape: f32[2,8,32], index: 1, kind: input, shape index: {}]
  %s2 = inlined_call_operand.vmem [shape: f32[1,32], index: 2, kind: input, shape index: {}]
  %s3 = inlined_call_operand.hbm [shape: f32[1,32], index: 3, kind: input, shape index: {}]
  %s4 = inlined_call_operand.vmem [shape: f32[32,32], index: 4, kind: input, shape index: {}]
  %s5 = inlined_call_operand.hbm [shape: f32[1,32], index: 5, kind: input, shape index: {}]
  %s6 = inlined_call_operand.vmem [shape: f32[32,64], index: 6, kind: input, shape index: {}]
  %s7 = inlined_call_operand.vmem [shape: f32[1,64], index: 7, kind: input, shape index: {}]
  %s8 = inlined_call_operand.vmem [shape: f32[32,32], index: 8, kind: input, shape index: {}]
  %s9 = inlined_call_operand.hbm [shape: f32[1,32], index: 9, kind: input, shape index: {}]
  %s10 = inlined_call_operand.vmem [shape: f32[2,8,32], index: 10, kind: output, shape index: {}]
  %s11 = sld [smem:[#allocation0]]
  $region85: #{cross_attention_encoder_layer.2} parent=0
    _
  %s13 = ssub.s32 1, %s11
  %s14 = scalar_select 0, %s13, %s11
  $region1: #{cross_attention_encoder_layer.2} parent=0
    #allocation2 [shape = 'u8[512]{0}', space=vmem, size = 0x400, scoped, tag = 'input window, operand 3, single buffered']
    #allocation3 [shape = 's32[2]{0}', space=sflag, size = 0x8, scoped, tag = 'scoped memory for cross_attention_encoder_layer.2']
    #allocation4 [shape = 'u8[512]{0}', space=vmem, size = 0x400, scoped, tag = 'input window, operand 5, single buffered']
    #allocation5 [shape = 's32[1]{0}', space=sflag, size = 0x4, scoped, tag = 'scoped memory for cross_attention_encoder_layer.2']
    #allocation6 [shape = 'u8[512]{0}', space=vmem, size = 0x400, scoped, tag = 'input window, operand 9, single buffered']
    %15 = vsyncpa [#allocation3], 0
    %16 = vsyncpa [#allocation5], 0
    loop: start=0, step=1, limit=4
    $region2: #{cross_attention_encoder_layer.2} parent=1 // loop_pre_header
      _
    $region3: #{cross_attention_encoder_layer.2} parent=1 // loop_header
      %s18 = sphi 0, %s22
      %p19 = scmp.ge.s32.totalorder %s18, 4
      %s28 = sphi 0, %s30
      %s31 = sphi 0, %s28
      %s32 = sphi 0, %s31
      %s48 = sphi 0, %s32
      %s54 = sphi 0, %s56
      %s57 = sphi 0, %s54
      %s58 = sphi 0, %s57
      %s74 = sphi 0, %s58
      %s78 = sphi 0, %s78
      %s80 = sphi 0, %s78
      %s81 = sphi 0, %s80
      %s95 = sphi 0, %s81
      %s99 = sphi 0, %s99
      %s101 = sphi 0, %s99
      %s102 = sphi 0, %s101
      %s116 = sphi 0, %s102
      %s120 = sphi 0, %s120
      %s122 = sphi 0, %s120
      %s123 = sphi 0, %s122
      %s137 = sphi 0, %s123
      %s141 = sphi 0, %s141
      %s143 = sphi 0, %s141
      %s144 = sphi 0, %s143
      %s158 = sphi 0, %s144
      %s162 = sphi 0, %s162
      %s164 = sphi 0, %s162
      %s165 = sphi 0, %s164
      %s179 = sphi 0, %s165
      %s183 = sphi 0, %s183
      %s185 = sphi 0, %s183
      %s186 = sphi 0, %s185
      %s200 = sphi 0, %s186
      %s204 = sphi 0, %s204
      %s206 = sphi 0, %s204
      %s207 = sphi 0, %s206
      %s221 = sphi 0, %s207
      %s225 = sphi 0, %s225
      %s227 = sphi 0, %s225
      %s228 = sphi 0, %s227
      %s242 = sphi 0, %s228
      %s248 = sphi 0, %s250
      %s251 = sphi 0, %s248
      %s252 = sphi 0, %s251
      %s268 = sphi 0, %s252
    $region4: #{cross_attention_encoder_layer.2} parent=1 // loop_header_branch
      %21 = sbr.rel (%p19) target = $region8
    $region5: #{cross_attention_encoder_layer.2} parent=1 // loop_body
      %s23 = ssub.s32 %s18, 1
      %s24 = ssub.s32 %s18, 2
      %s25 = sadd.s32 %s18, 1
      %s26 = ssub.s32 %s18, %s25
      %p27 = scmp.eq.s32.totalorder %s26, 0
      %s29 = sadd.s32 %s28, 1
      %s30 = scalar_select %p27, %s28, %s29
      %p33 = pneg %p27
      %p34 = scmp.eq.s32.totalorder %s18, 1
      %p35 = por %p33, %p34
      %p36 = scmp.ne.s32.totalorder %s28, %s31
      %p37 = scmp.eq.s32.totalorder %s18, 0
      %p38 = por %p36, %p37
      %p39 = scmp.ne.s32.totalorder %s28, %s31
      %p40 = scmp.eq.s32.totalorder %s23, 1
      %p41 = por %p39, %p40
      %p42 = scmp.ne.s32.totalorder %s31, %s32
      %p43 = scmp.eq.s32.totalorder %s23, 0
      %p44 = por %p42, %p43
      %p45 = scmp.ne.s32.totalorder %s31, %s32
      %p46 = scmp.eq.s32.totalorder %s24, 1
      %p47 = por %p45, %p46
      %p49 = scmp.ne.s32.totalorder %s32, %s48
      %p50 = scmp.eq.s32.totalorder %s24, 0
      %p51 = por %p49, %p50
      %s52 = ssub.s32 %s18, %s25
      %p53 = scmp.eq.s32.totalorder %s52, 0
      %s55 = sadd.s32 %s54, 1
      %s56 = scalar_select %p53, %s54, %s55
      %p59 = pneg %p53
      %p60 = scmp.eq.s32.totalorder %s18, 1
      %p61 = por %p59, %p60
      %p62 = scmp.ne.s32.totalorder %s54, %s57
      %p63 = scmp.eq.s32.totalorder %s18, 0
      %p64 = por %p62, %p63
      %p65 = scmp.ne.s32.totalorder %s54, %s57
      %p66 = scmp.eq.s32.totalorder %s23, 1
      %p67 = por %p65, %p66
      %p68 = scmp.ne.s32.totalorder %s57, %s58
      %p69 = scmp.eq.s32.totalorder %s23, 0
      %p70 = por %p68, %p69
      %p71 = scmp.ne.s32.totalorder %s57, %s58
      %p72 = scmp.eq.s32.totalorder %s24, 1
      %p73 = por %p71, %p72
      %p75 = scmp.ne.s32.totalorder %s58, %s74
      %p76 = scmp.eq.s32.totalorder %s24, 0
      %p77 = por %p75, %p76
      %s79 = sadd.s32 %s78, 1
      %p82 = scmp.eq.s32.totalorder %s18, 1
      %p83 = scmp.ne.s32.totalorder %s78, %s80
      %p84 = scmp.eq.s32.totalorder %s18, 0
      %p85 = por %p83, %p84
      %p86 = scmp.ne.s32.totalorder %s78, %s80
      %p87 = scmp.eq.s32.totalorder %s23, 1
      %p88 = por %p86, %p87
      %p89 = scmp.ne.s32.totalorder %s80, %s81
      %p90 = scmp.eq.s32.totalorder %s23, 0
      %p91 = por %p89, %p90
      %p92 = scmp.ne.s32.totalorder %s80, %s81
      %p93 = scmp.eq.s32.totalorder %s24, 1
      %p94 = por %p92, %p93
      %p96 = scmp.ne.s32.totalorder %s81, %s95
      %p97 = scmp.eq.s32.totalorder %s24, 0
      %p98 = por %p96, %p97
      %s100 = sadd.s32 %s99, 1
      %p103 = scmp.eq.s32.totalorder %s18, 1
      %p104 = scmp.ne.s32.totalorder %s99, %s101
      %p105 = scmp.eq.s32.totalorder %s18, 0
      %p106 = por %p104, %p105
      %p107 = scmp.ne.s32.totalorder %s99, %s101
      %p108 = scmp.eq.s32.totalorder %s23, 1
      %p109 = por %p107, %p108
      %p110 = scmp.ne.s32.totalorder %s101, %s102
      %p111 = scmp.eq.s32.totalorder %s23, 0
      %p112 = por %p110, %p111
      %p113 = scmp.ne.s32.totalorder %s101, %s102
      %p114 = scmp.eq.s32.totalorder %s24, 1
      %p115 = por %p113, %p114
      %p117 = scmp.ne.s32.totalorder %s102, %s116
      %p118 = scmp.eq.s32.totalorder %s24, 0
      %p119 = por %p117, %p118
      %s121 = sadd.s32 %s120, 1
      %p124 = scmp.eq.s32.totalorder %s18, 1
      %p125 = scmp.ne.s32.totalorder %s120, %s122
      %p126 = scmp.eq.s32.totalorder %s18, 0
      %p127 = por %p125, %p126
      %p128 = scmp.ne.s32.totalorder %s120, %s122
      %p129 = scmp.eq.s32.totalorder %s23, 1
      %p130 = por %p128, %p129
      %p131 = scmp.ne.s32.totalorder %s122, %s123
      %p132 = scmp.eq.s32.totalorder %s23, 0
      %p133 = por %p131, %p132
      %p134 = scmp.ne.s32.totalorder %s122, %s123
      %p135 = scmp.eq.s32.totalorder %s24, 1
      %p136 = por %p134, %p135
      %p138 = scmp.ne.s32.totalorder %s123, %s137
      %p139 = scmp.eq.s32.totalorder %s24, 0
      %p140 = por %p138, %p139
      %s142 = sadd.s32 %s141, 1
      %p145 = scmp.eq.s32.totalorder %s18, 1
      %p146 = scmp.ne.s32.totalorder %s141, %s143
      %p147 = scmp.eq.s32.totalorder %s18, 0
      %p148 = por %p146, %p147
      %p149 = scmp.ne.s32.totalorder %s141, %s143
      %p150 = scmp.eq.s32.totalorder %s23, 1
      %p151 = por %p149, %p150
      %p152 = scmp.ne.s32.totalorder %s143, %s144
      %p153 = scmp.eq.s32.totalorder %s23, 0
      %p154 = por %p152, %p153
      %p155 = scmp.ne.s32.totalorder %s143, %s144
      %p156 = scmp.eq.s32.totalorder %s24, 1
      %p157 = por %p155, %p156
      %p159 = scmp.ne.s32.totalorder %s144, %s158
      %p160 = scmp.eq.s32.totalorder %s24, 0
      %p161 = por %p159, %p160
      %s163 = sadd.s32 %s162, 1
      %p166 = scmp.eq.s32.totalorder %s18, 1
      %p167 = scmp.ne.s32.totalorder %s162, %s164
      %p168 = scmp.eq.s32.totalorder %s18, 0
      %p169 = por %p167, %p168
      %p170 = scmp.ne.s32.totalorder %s162, %s164
      %p171 = scmp.eq.s32.totalorder %s23, 1
      %p172 = por %p170, %p171
      %p173 = scmp.ne.s32.totalorder %s164, %s165
      %p174 = scmp.eq.s32.totalorder %s23, 0
      %p175 = por %p173, %p174
      %p176 = scmp.ne.s32.totalorder %s164, %s165
      %p177 = scmp.eq.s32.totalorder %s24, 1
      %p178 = por %p176, %p177
      %p180 = scmp.ne.s32.totalorder %s165, %s179
      %p181 = scmp.eq.s32.totalorder %s24, 0
      %p182 = por %p180, %p181
      %s184 = sadd.s32 %s183, 1
      %p187 = scmp.eq.s32.totalorder %s18, 1
      %p188 = scmp.ne.s32.totalorder %s183, %s185
      %p189 = scmp.eq.s32.totalorder %s18, 0
      %p190 = por %p188, %p189
      %p191 = scmp.ne.s32.totalorder %s183, %s185
      %p192 = scmp.eq.s32.totalorder %s23, 1
      %p193 = por %p191, %p192
      %p194 = scmp.ne.s32.totalorder %s185, %s186
      %p195 = scmp.eq.s32.totalorder %s23, 0
      %p196 = por %p194, %p195
      %p197 = scmp.ne.s32.totalorder %s185, %s186
      %p198 = scmp.eq.s32.totalorder %s24, 1
      %p199 = por %p197, %p198
      %p201 = scmp.ne.s32.totalorder %s186, %s200
      %p202 = scmp.eq.s32.totalorder %s24, 0
      %p203 = por %p201, %p202
      %s205 = sadd.s32 %s204, 1
      %p208 = scmp.eq.s32.totalorder %s18, 1
      %p209 = scmp.ne.s32.totalorder %s204, %s206
      %p210 = scmp.eq.s32.totalorder %s18, 0
      %p211 = por %p209, %p210
      %p212 = scmp.ne.s32.totalorder %s204, %s206
      %p213 = scmp.eq.s32.totalorder %s23, 1
      %p214 = por %p212, %p213
      %p215 = scmp.ne.s32.totalorder %s206, %s207
      %p216 = scmp.eq.s32.totalorder %s23, 0
      %p217 = por %p215, %p216
      %p218 = scmp.ne.s32.totalorder %s206, %s207
      %p219 = scmp.eq.s32.totalorder %s24, 1
      %p220 = por %p218, %p219
      %p222 = scmp.ne.s32.totalorder %s207, %s221
      %p223 = scmp.eq.s32.totalorder %s24, 0
      %p224 = por %p222, %p223
      %s226 = sadd.s32 %s225, 1
      %p229 = scmp.eq.s32.totalorder %s18, 1
      %p230 = scmp.ne.s32.totalorder %s225, %s227
      %p231 = scmp.eq.s32.totalorder %s18, 0
      %p232 = por %p230, %p231
      %p233 = scmp.ne.s32.totalorder %s225, %s227
      %p234 = scmp.eq.s32.totalorder %s23, 1
      %p235 = por %p233, %p234
      %p236 = scmp.ne.s32.totalorder %s227, %s228
      %p237 = scmp.eq.s32.totalorder %s23, 0
      %p238 = por %p236, %p237
      %p239 = scmp.ne.s32.totalorder %s227, %s228
      %p240 = scmp.eq.s32.totalorder %s24, 1
      %p241 = por %p239, %p240
      %p243 = scmp.ne.s32.totalorder %s228, %s242
      %p244 = scmp.eq.s32.totalorder %s24, 0
      %p245 = por %p243, %p244
      %s246 = ssub.s32 %s18, %s25
      %p247 = scmp.eq.s32.totalorder %s246, 0
      %s249 = sadd.s32 %s248, 1
      %s250 = scalar_select %p247, %s248, %s249
      %p253 = pneg %p247
      %p254 = scmp.eq.s32.totalorder %s18, 1
      %p255 = por %p253, %p254
      %p256 = scmp.ne.s32.totalorder %s248, %s251
      %p257 = scmp.eq.s32.totalorder %s18, 0
      %p258 = por %p256, %p257
      %p259 = scmp.ne.s32.totalorder %s248, %s251
      %p260 = scmp.eq.s32.totalorder %s23, 1
      %p261 = por %p259, %p260
      %p262 = scmp.ne.s32.totalorder %s251, %s252
      %p263 = scmp.eq.s32.totalorder %s23, 0
      %p264 = por %p262, %p263
      %p265 = scmp.ne.s32.totalorder %s251, %s252
      %p266 = scmp.eq.s32.totalorder %s24, 1
      %p267 = por %p265, %p266
      %p269 = scmp.ne.s32.totalorder %s252, %s268
      %p270 = scmp.eq.s32.totalorder %s24, 0
      %p271 = por %p269, %p270
      %p272 = scmp.le.s32.totalorder 1, %s18
      %p273 = scmp.lt.s32.totalorder %s18, 3
      %p274 = pnand %p272, %p273
      %p275 = pneg %p274
      // Predicated region
      $region9: #{cross_attention_encoder_layer.2} parent=5 // pred_check
        _
      $region10: #{cross_attention_encoder_layer.2} parent=5 // pred_check_branch
        %277 = sbr.rel (%p274) target = $region12
      $region11: #{cross_attention_encoder_layer.2} parent=5 // pred_region
        %s278 = ssub.s32 %s18, 1
        // Predicated region
        $region13: #{cross_attention_encoder_layer.2} parent=11 // pred_check
          %p279 = pneg %p91
        $region14: #{cross_attention_encoder_layer.2} parent=11 // pred_check_branch
          %281 = sbr.rel (%p279) target = $region16
        $region15: #{cross_attention_encoder_layer.2} parent=11 // pred_region
          _
        $region16: #{cross_attention_encoder_layer.2} parent=11 // pred_fallthru
          _
        // Predicated region
        $region17: #{cross_attention_encoder_layer.2} parent=11 // pred_check
          %p282 = pneg %p112
        $region18: #{cross_attention_encoder_layer.2} parent=11 // pred_check_branch
          %284 = sbr.rel (%p282) target = $region20
        $region19: #{cross_attention_encoder_layer.2} parent=11 // pred_region
          %s286 = ssub.s32 16, 16
          %287 = vsyncadd [#allocation3], %s286
          %s289 = sshll.u32 [#allocation2], 4
          %s290 = int_to_ptr.vmem [resolvable:$true] %s289
          %292 = dma.hbm_to_vmem [thread:$0]  %s3, 16, %s290, [#allocation3]
        $region20: #{cross_attention_encoder_layer.2} parent=11 // pred_fallthru
          _
        // Predicated region
        $region21: #{cross_attention_encoder_layer.2} parent=11 // pred_check
          %p293 = pneg %p133
        $region22: #{cross_attention_encoder_layer.2} parent=11 // pred_check_branch
          %295 = sbr.rel (%p293) target = $region24
        $region23: #{cross_attention_encoder_layer.2} parent=11 // pred_region
          _
        $region24: #{cross_attention_encoder_layer.2} parent=11 // pred_fallthru
          _
        // Predicated region
        $region25: #{cross_attention_encoder_layer.2} parent=11 // pred_check
          %p296 = pneg %p154
        $region26: #{cross_attention_encoder_layer.2} parent=11 // pred_check_branch
          %298 = sbr.rel (%p296) target = $region28
        $region27: #{cross_attention_encoder_layer.2} parent=11 // pred_region
          %s300 = ssub.s32 16, 16
          %301 = vsyncadd [#allocation5], %s300
          %s303 = sshll.u32 [#allocation4], 4
          %s304 = int_to_ptr.vmem [resolvable:$true] %s303
          %306 = dma.hbm_to_vmem [thread:$0]  %s5, 16, %s304, [#allocation5]
        $region28: #{cross_attention_encoder_layer.2} parent=11 // pred_fallthru
          _
        // Predicated region
        $region29: #{cross_attention_encoder_layer.2} parent=11 // pred_check
          %p307 = pneg %p175
        $region30: #{cross_attention_encoder_layer.2} parent=11 // pred_check_branch
          %309 = sbr.rel (%p307) target = $region32
        $region31: #{cross_attention_encoder_layer.2} parent=11 // pred_region
          _
        $region32: #{cross_attention_encoder_layer.2} parent=11 // pred_fallthru
          _
        // Predicated region
        $region33: #{cross_attention_encoder_layer.2} parent=11 // pred_check
          %p310 = pneg %p196
        $region34: #{cross_attention_encoder_layer.2} parent=11 // pred_check_branch
          %312 = sbr.rel (%p310) target = $region36
        $region35: #{cross_attention_encoder_layer.2} parent=11 // pred_region
          _
        $region36: #{cross_attention_encoder_layer.2} parent=11 // pred_fallthru
          _
        // Predicated region
        $region37: #{cross_attention_encoder_layer.2} parent=11 // pred_check
          %p313 = pneg %p217
        $region38: #{cross_attention_encoder_layer.2} parent=11 // pred_check_branch
          %315 = sbr.rel (%p313) target = $region40
        $region39: #{cross_attention_encoder_layer.2} parent=11 // pred_region
          _
        $region40: #{cross_attention_encoder_layer.2} parent=11 // pred_fallthru
          _
        // Predicated region
        $region41: #{cross_attention_encoder_layer.2} parent=11 // pred_check
          %p316 = pneg %p238
        $region42: #{cross_attention_encoder_layer.2} parent=11 // pred_check_branch
          %318 = sbr.rel (%p316) target = $region44
        $region43: #{cross_attention_encoder_layer.2} parent=11 // pred_region
          %s320 = ssub.s32 16, 16
          %321 = vsyncadd [#allocation5], %s320
          %s323 = sshll.u32 [#allocation6], 4
          %s324 = int_to_ptr.vmem [resolvable:$true] %s323
          %326 = dma.hbm_to_vmem [thread:$0]  %s9, 16, %s324, [#allocation5]
        $region44: #{cross_attention_encoder_layer.2} parent=11 // pred_fallthru
          _
      $region12: #{cross_attention_encoder_layer.2} parent=5 // pred_fallthru
        _
      %p327 = scmp.lt.s32.totalorder %s18, 2
      // Predicated region
      $region45: #{cross_attention_encoder_layer.2} parent=5 // pred_check
        %p328 = pneg %p327
      $region46: #{cross_attention_encoder_layer.2} parent=5 // pred_check_branch
        %330 = sbr.rel (%p328) target = $region48
      $region47: #{cross_attention_encoder_layer.2} parent=5 // pred_region
        // Predicated region
        $region49: #{cross_attention_encoder_layer.2} parent=47 // pred_check
          %p331 = pneg %p38
        $region50: #{cross_attention_encoder_layer.2} parent=47 // pred_check_branch
          %333 = sbr.rel (%p331) target = $region52
        $region51: #{cross_attention_encoder_layer.2} parent=47 // pred_region
          %p334 = scmp.lt.s32.totalorder %s18, 1
          %s335 = scalar_select %p334, %s18, 1
          %s336 = smul.addr %s335, 8
          %s337 = scalar_lea.vmem %s0, %s336
        $region52: #{cross_attention_encoder_layer.2} parent=47 // pred_fallthru
          _
        // Predicated region
        $region53: #{cross_attention_encoder_layer.2} parent=47 // pred_check
          %p338 = pneg %p64
        $region54: #{cross_attention_encoder_layer.2} parent=47 // pred_check_branch
          %340 = sbr.rel (%p338) target = $region56
        $region55: #{cross_attention_encoder_layer.2} parent=47 // pred_region
          %p341 = scmp.lt.s32.totalorder %s18, 1
          %s342 = scalar_select %p341, %s18, 1
          %s343 = smul.addr %s342, 8
          %s344 = scalar_lea.vmem %s1, %s343
        $region56: #{cross_attention_encoder_layer.2} parent=47 // pred_fallthru
          _
      $region48: #{cross_attention_encoder_layer.2} parent=5 // pred_fallthru
        _
      %p345 = scmp.le.s32.totalorder 1, %s18
      %p346 = scmp.lt.s32.totalorder %s18, 3
      %p347 = pnand %p345, %p346
      %p348 = pneg %p347
      // Predicated region
      $region57: #{cross_attention_encoder_layer.2} parent=5 // pred_check
        _
      $region58: #{cross_attention_encoder_layer.2} parent=5 // pred_check_branch
        %350 = sbr.rel (%p347) target = $region60
      $region59: #{cross_attention_encoder_layer.2} parent=5 // pred_region
        %s351 = ssub.s32 %s18, 1
        // Predicated region
        $region61: #{cross_attention_encoder_layer.2} parent=59 // pred_check
          %p352 = pneg %p112
        $region62: #{cross_attention_encoder_layer.2} parent=59 // pred_check_branch
          %354 = sbr.rel (%p352) target = $region64
        $region63: #{cross_attention_encoder_layer.2} parent=59 // pred_region
          %355 = dma.done [#allocation3], 16
        $region64: #{cross_attention_encoder_layer.2} parent=59 // pred_fallthru
          _
        // Predicated region
        $region65: #{cross_attention_encoder_layer.2} parent=59 // pred_check
          %p356 = pneg %p154
        $region66: #{cross_attention_encoder_layer.2} parent=59 // pred_check_branch
          %358 = sbr.rel (%p356) target = $region68
        $region67: #{cross_attention_encoder_layer.2} parent=59 // pred_region
          %359 = dma.done [#allocation5], 16
        $region68: #{cross_attention_encoder_layer.2} parent=59 // pred_fallthru
          _
        // Predicated region
        $region69: #{cross_attention_encoder_layer.2} parent=59 // pred_check
          %p360 = pneg %p238
        $region70: #{cross_attention_encoder_layer.2} parent=59 // pred_check_branch
          %362 = sbr.rel (%p360) target = $region72
        $region71: #{cross_attention_encoder_layer.2} parent=59 // pred_region
          %363 = dma.done [#allocation5], 16
        $region72: #{cross_attention_encoder_layer.2} parent=59 // pred_fallthru
          _
        %p364 = scmp.lt.s32.totalorder %s23, 1
        %s365 = scalar_select %p364, %s23, 1
        %s366 = smul.addr %s365, 8
        %s367 = scalar_lea.vmem %s0, %s366
        %p368 = pneg %p44
        %p369 = pneg %p41
        %p370 = scmp.lt.s32.totalorder %s23, 1
        %s371 = scalar_select %p370, %s23, 1
        %s372 = smul.addr %s371, 8
        %s373 = scalar_lea.vmem %s1, %s372
        %p374 = pneg %p70
        %p375 = pneg %p67
        %p376 = pneg %p91
        %p377 = pneg %p88
        %p378 = pneg %p112
        %p379 = pneg %p109
        %p380 = pneg %p133
        %p381 = pneg %p130
        %p382 = pneg %p154
        %p383 = pneg %p151
        %p384 = pneg %p175
        %p385 = pneg %p172
        %p386 = pneg %p196
        %p387 = pneg %p193
        %p388 = pneg %p217
        %p389 = pneg %p214
        %p390 = pneg %p238
        %p391 = pneg %p235
        %p392 = pneg %p264
        %p393 = pneg %p261
        %p394 = scmp.lt.s32.totalorder %s23, 1
        %s395 = scalar_select %p394, %s23, 1
        %s396 = smul.addr %s395, 8
        %s397 = scalar_lea.vmem %s10, %s396
        %p398 = scmp.lt.s32.totalorder %s23, 1
        %s399 = scalar_select %p398, %s23, 1
        %s400 = smul.addr %s399, 8
        %s401 = scalar_lea.vmem %s0, %s400
        %p402 = scmp.lt.s32.totalorder %s23, 1
        %s403 = scalar_select %p402, %s23, 1
        %s404 = smul.addr %s403, 8
        %s405 = scalar_lea.vmem %s1, %s404
        %p406 = scmp.lt.s32.totalorder %s23, 1
        %s407 = scalar_select %p406, %s23, 1
        %s408 = smul.addr %s407, 8
        %s409 = scalar_lea.vmem %s10, %s408
        %v410 = vld [vmem:[%s401] sm:$0xff]
        %v411 = vld [vmem:[%s405] sm:$0xff]
        %v412 = vld [vmem:[%s2] sm:$0x1]
        %v413 = vld [vmem:[#allocation2] sm:$0x1]
        %vm414 = vcmask 261120
        %v415 = vsel %vm414, %v410, 0.0
        %416 = vadd.xlane.f32.xlu0 %v415
        %v417 = vpop.xlane.xlu0 %416
        %v418 = vrcp.pop 32.0
        %v419 = vmul.f32 %v417, %v418
        %v420 = vsub.f32 %v410, %v419
        %v421 = vmul.f32 %v420, %v420
        %v422 = vsel %vm414, %v421, 0.0
        %423 = vadd.xlane.f32.xlu0 %v422
        %v424 = vpop.xlane.xlu0 %423
        %v425 = vmul.f32 %v424, 0.032258064
        %v426 = vrsqrt.pop %v425
        %v427 = vmul.f32 %v425, %v426
        %vm428 = vcmp.eq.f32.partialorder %v425, inf
        %v429 = vsel %vm428, %v425, %v427
        %vm430 = vcmp.eq.f32.partialorder %v425, 0.0
        %v431 = vand.u32 %v425, 2147483648
        %v432 = vsel %vm430, %v431, %v429
        %v433 = vadd.f32 %v432, 1e-06
        %v434 = vrcp.pop %v433
        %v436 = vlaneseq
        %v437 = vshrl.u32 %v436, 7
        %v438 = vsub.s32 0, %v437
        %v439 = vrot.slane %v412, %v438
        %v441 = vmul.f32 %v439, %v420
        %v442 = vmul.f32 %v441, %v434
        %v444 = vlaneseq
        %v445 = vshrl.u32 %v444, 7
        %v446 = vsub.s32 0, %v445
        %v447 = vrot.slane %v413, %v446
        %v449 = vadd.f32 %v442, %v447
        %v450 = vld [vmem:[%s4] sm:$0xff]
        %v451 = vld [vmem:[%s4 + $0x8] sm:$0xff]
        %v452 = vld [vmem:[%s4 + $0x10] sm:$0xff]
        %v453 = vld [vmem:[%s4 + $0x18] sm:$0xff]
        %v454 = vld [vmem:[#allocation4] sm:$0x1]
        %v456 = vlaneseq
        %v457 = vshrl.u32 %v456, 7
        %v458 = vsub.s32 0, %v457
        %v459 = vrot.slane %v454, %v458
        %v462 = vsel %vm414, %v449, 0
        %464 = vmatprep.subr.mxu0 0.0
        %465 = vmatpush1.msra.mxu0 %v450
        %466 = vmatprep.subr.mxu0 0.0
        %467 = vmatpush1.msra.mxu0 %v451
        %468 = vmatprep.subr.mxu0 0.0
        %469 = vmatpush1.msra.mxu0 %v452
        %470 = vmatprep.subr.mxu0 0.0
        %471 = vmatpush1.msra.mxu0 %v453
        %472 = vmatprep.subr.mxu0 0.0
        %473 = vmatpush1.msra.mxu0 0.0
        %474 = vmatprep.subr.mxu0 0.0
        %475 = vmatpush1.msra.mxu0 0.0
        %476 = vmatprep.subr.mxu0 0.0
        %477 = vmatpush1.msra.mxu0 0.0
        %478 = vmatprep.subr.mxu0 0.0
        %479 = vmatpush1.msra.mxu0 0.0
        %480 = vmatprep.subr.mxu0 0.0
        %481 = vmatpush1.msra.mxu0 0.0
        %482 = vmatprep.subr.mxu0 0.0
        %483 = vmatpush1.msra.mxu0 0.0
        %484 = vmatprep.subr.mxu0 0.0
        %485 = vmatpush1.msra.mxu0 0.0
        %486 = vmatprep.subr.mxu0 0.0
        %487 = vmatpush1.msra.mxu0 0.0
        %488 = vmatprep.subr.mxu0 0.0
        %489 = vmatpush1.msra.mxu0 0.0
        %490 = vmatprep.subr.mxu0 0.0
        %491 = vmatpush1.msra.mxu0 0.0
        %492 = vmatprep.subr.mxu0 0.0
        %493 = vmatpush1.msra.mxu0 0.0
        %494 = vmatprep.subr.mxu0 0.0
        %495 = vmatpush1.msra.mxu0 0.0
        %496 = vmatprep.subr.mxu0 0.0
        %497 = vmatpush1.msra.mxu0 0.0
        %498 = vmatprep.subr.mxu0 0.0
        %499 = vmatpush1.msra.mxu0 0.0
        %500 = vmatprep.subr.mxu0 0.0
        %501 = vmatpush1.msra.mxu0 0.0
        %502 = vmatprep.subr.mxu0 0.0
        %503 = vmatpush1.msra.mxu0 0.0
        %504 = vmatprep.subr.mxu0 0.0
        %505 = vmatpush1.msra.mxu0 0.0
        %506 = vmatprep.subr.mxu0 0.0
        %507 = vmatpush1.msra.mxu0 0.0
        %508 = vmatprep.subr.mxu0 0.0
        %509 = vmatpush1.msra.mxu0 0.0
        %510 = vmatprep.subr.mxu0 0.0
        %511 = vmatpush1.msra.mxu0 0.0
        %512 = vmatprep.subr.mxu0 0.0
        %513 = vmatpush1.msra.mxu0 0.0
        %514 = vmatprep.subr.mxu0 0.0
        %515 = vmatpush1.msra.mxu0 0.0
        %516 = vmatprep.subr.mxu0 0.0
        %517 = vmatpush1.msra.mxu0 0.0
        %518 = vmatprep.subr.mxu0 0.0
        %519 = vmatpush1.msra.mxu0 0.0
        %520 = vmatprep.subr.mxu0 0.0
        %521 = vmatpush1.msra.mxu0 0.0
        %522 = vmatprep.subr.mxu0 0.0
        %523 = vmatpush1.msra.mxu0 0.0
        %524 = vmatprep.subr.mxu0 0.0
        %525 = vmatpush1.msra.mxu0 0.0
        %526 = vmatprep.subr.mxu0 0.0
        %527 = vmatpush1.msra.mxu0 0.0
        %528 = vmatprep.mubr.f32.mxu0 0.0
        %529 = vmatmul.mubr.f32.gmra.mrb[0].mxu0 %v462
        %v530 = vpop.f32.mrb[0].mxu0
        %v531 = vadd.f32 %v459, %v530
        %v532 = vpop.f32.mrb[0].mxu0
        %533 = vdwg.mxu0
        %v534 = vmul.f32 %v531, 0.35355338
        %v535 = vld [vmem:[%s6] sm:$0xff]
        %v536 = vld [vmem:[%s6 + $0x8] sm:$0xff]
        %v537 = vld [vmem:[%s6 + $0x10] sm:$0xff]
        %v538 = vld [vmem:[%s6 + $0x18] sm:$0xff]
        %v539 = vld [vmem:[%s7] sm:$0x1]
        %v541 = vlaneseq
        %v542 = vshrl.u32 %v541, 7
        %v543 = vsub.s32 0, %v542
        %v544 = vrot.slane %v539, %v543
        %v547 = vsel %vm414, %v411, 0
        %549 = vmatprep.subr.mxu0 0.0
        %550 = vmatpush1.msra.mxu0 %v535
        %551 = vmatprep.subr.mxu0 0.0
        %552 = vmatpush1.msra.mxu0 %v536
        %553 = vmatprep.subr.mxu0 0.0
        %554 = vmatpush1.msra.mxu0 %v537
        %555 = vmatprep.subr.mxu0 0.0
        %556 = vmatpush1.msra.mxu0 %v538
        %557 = vmatprep.subr.mxu0 0.0
        %558 = vmatpush1.msra.mxu0 0.0
        %559 = vmatprep.subr.mxu0 0.0
        %560 = vmatpush1.msra.mxu0 0.0
        %561 = vmatprep.subr.mxu0 0.0
        %562 = vmatpush1.msra.mxu0 0.0
        %563 = vmatprep.subr.mxu0 0.0
        %564 = vmatpush1.msra.mxu0 0.0
        %565 = vmatprep.subr.mxu0 0.0
        %566 = vmatpush1.msra.mxu0 0.0
        %567 = vmatprep.subr.mxu0 0.0
        %568 = vmatpush1.msra.mxu0 0.0
        %569 = vmatprep.subr.mxu0 0.0
        %570 = vmatpush1.msra.mxu0 0.0
        %571 = vmatprep.subr.mxu0 0.0
        %572 = vmatpush1.msra.mxu0 0.0
        %573 = vmatprep.subr.mxu0 0.0
        %574 = vmatpush1.msra.mxu0 0.0
        %575 = vmatprep.subr.mxu0 0.0
        %576 = vmatpush1.msra.mxu0 0.0
        %577 = vmatprep.subr.mxu0 0.0
        %578 = vmatpush1.msra.mxu0 0.0
        %579 = vmatprep.subr.mxu0 0.0
        %580 = vmatpush1.msra.mxu0 0.0
        %581 = vmatprep.subr.mxu0 0.0
        %582 = vmatpush1.msra.mxu0 0.0
        %583 = vmatprep.subr.mxu0 0.0
        %584 = vmatpush1.msra.mxu0 0.0
        %585 = vmatprep.subr.mxu0 0.0
        %586 = vmatpush1.msra.mxu0 0.0
        %587 = vmatprep.subr.mxu0 0.0
        %588 = vmatpush1.msra.mxu0 0.0
        %589 = vmatprep.subr.mxu0 0.0
        %590 = vmatpush1.msra.mxu0 0.0
        %591 = vmatprep.subr.mxu0 0.0
        %592 = vmatpush1.msra.mxu0 0.0
        %593 = vmatprep.subr.mxu0 0.0
        %594 = vmatpush1.msra.mxu0 0.0
        %595 = vmatprep.subr.mxu0 0.0
        %596 = vmatpush1.msra.mxu0 0.0
        %597 = vmatprep.subr.mxu0 0.0
        %598 = vmatpush1.msra.mxu0 0.0
        %599 = vmatprep.subr.mxu0 0.0
        %600 = vmatpush1.msra.mxu0 0.0
        %601 = vmatprep.subr.mxu0 0.0
        %602 = vmatpush1.msra.mxu0 0.0
        %603 = vmatprep.subr.mxu0 0.0
        %604 = vmatpush1.msra.mxu0 0.0
        %605 = vmatprep.subr.mxu0 0.0
        %606 = vmatpush1.msra.mxu0 0.0
        %607 = vmatprep.subr.mxu0 0.0
        %608 = vmatpush1.msra.mxu0 0.0
        %609 = vmatprep.subr.mxu0 0.0
        %610 = vmatpush1.msra.mxu0 0.0
        %611 = vmatprep.subr.mxu0 0.0
        %612 = vmatpush1.msra.mxu0 0.0
        %613 = vmatprep.mubr.f32.mxu0 0.0
        %614 = vmatmul.mubr.f32.gmra.mrb[0].mxu0 %v547
        %v615 = vpop.f32.mrb[0].mxu0
        %v616 = vadd.f32 %v544, %v615
        %v617 = vpop.f32.mrb[0].mxu0
        %618 = vdwg.mxu0
        %vm619 = vcmask 64512
        %v621 = vsel %vm619, %v534, 0
        %v624 = vsel %vm619, %v616, 0
        %626 = vmatprep.subr.mxu0 0.0
        %627 = vmatpush1.xpose.msra.mxu0 %v624
        %628 = vmatprep.subr.mxu0 0.0
        %629 = vmatpush1.xpose.msra.mxu0 0.0
        %630 = vmatprep.subr.mxu0 0.0
        %631 = vmatpush1.xpose.msra.mxu0 0.0
        %632 = vmatprep.subr.mxu0 0.0
        %633 = vmatpush1.xpose.msra.mxu0 0.0
        %634 = vmatprep.subr.mxu0 0.0
        %635 = vmatpush1.xpose.msra.mxu0 0.0
        %636 = vmatprep.subr.mxu0 0.0
        %637 = vmatpush1.xpose.msra.mxu0 0.0
        %638 = vmatprep.subr.mxu0 0.0
        %639 = vmatpush1.xpose.msra.mxu0 0.0
        %640 = vmatprep.subr.mxu0 0.0
        %641 = vmatpush1.xpose.msra.mxu0 0.0
        %642 = vmatprep.subr.mxu0 0.0
        %643 = vmatpush1.xpose.msra.mxu0 0.0
        %644 = vmatprep.subr.mxu0 0.0
        %645 = vmatpush1.xpose.msra.mxu0 0.0
        %646 = vmatprep.subr.mxu0 0.0
        %647 = vmatpush1.xpose.msra.mxu0 0.0
        %648 = vmatprep.subr.mxu0 0.0
        %649 = vmatpush1.xpose.msra.mxu0 0.0
        %650 = vmatprep.subr.mxu0 0.0
        %651 = vmatpush1.xpose.msra.mxu0 0.0
        %652 = vmatprep.subr.mxu0 0.0
        %653 = vmatpush1.xpose.msra.mxu0 0.0
        %654 = vmatprep.subr.mxu0 0.0
        %655 = vmatpush1.xpose.msra.mxu0 0.0
        %656 = vmatprep.subr.mxu0 0.0
        %657 = vmatpush1.xpose.msra.mxu0 0.0
        %658 = vmatprep.subr.mxu0 0.0
        %659 = vmatpush1.xpose.msra.mxu0 0.0
        %660 = vmatprep.subr.mxu0 0.0
        %661 = vmatpush1.xpose.msra.mxu0 0.0
        %662 = vmatprep.subr.mxu0 0.0
        %663 = vmatpush1.xpose.msra.mxu0 0.0
        %664 = vmatprep.subr.mxu0 0.0
        %665 = vmatpush1.xpose.msra.mxu0 0.0
        %666 = vmatprep.subr.mxu0 0.0
        %667 = vmatpush1.xpose.msra.mxu0 0.0
        %668 = vmatprep.subr.mxu0 0.0
        %669 = vmatpush1.xpose.msra.mxu0 0.0
        %670 = vmatprep.subr.mxu0 0.0
        %671 = vmatpush1.xpose.msra.mxu0 0.0
        %672 = vmatprep.subr.mxu0 0.0
        %673 = vmatpush1.xpose.msra.mxu0 0.0
        %674 = vmatprep.subr.mxu0 0.0
        %675 = vmatpush1.xpose.msra.mxu0 0.0
        %676 = vmatprep.subr.mxu0 0.0
        %677 = vmatpush1.xpose.msra.mxu0 0.0
        %678 = vmatprep.subr.mxu0 0.0
        %679 = vmatpush1.xpose.msra.mxu0 0.0
        %680 = vmatprep.subr.mxu0 0.0
        %681 = vmatpush1.xpose.msra.mxu0 0.0
        %682 = vmatprep.subr.mxu0 0.0
        %683 = vmatpush1.xpose.msra.mxu0 0.0
        %684 = vmatprep.subr.mxu0 0.0
        %685 = vmatpush1.xpose.msra.mxu0 0.0
        %686 = vmatprep.subr.mxu0 0.0
        %687 = vmatpush1.xpose.msra.mxu0 0.0
        %688 = vmatprep.subr.mxu0 0.0
        %689 = vmatpush1.xpose.msra.mxu0 0.0
        %690 = vmatprep.mubr.f32.mxu0 0.0
        %691 = vmatmul.mubr.f32.gmra.mrb[0].mxu0 %v621
        %v692 = vpop.f32.mrb[0].mxu0
        %v693 = vadd.f32 0.0, %v692
        %v694 = vpop.f32.mrb[0].mxu0
        %695 = vdwg.mxu0
        %v696 = vsel %vm619, %v693, -inf
        %697 = vmax.xlane.f32.xlu0 %v696
        %v698 = vpop.xlane.xlu0 %697
        %v699 = vsub.f32 %v693, %v698
        %v700 = vmul.f32 %v699, 1.442695
        %v701 = vpow.pop %v700
        %v702 = vsel %vm619, %v701, 0.0
        %703 = vadd.xlane.f32.xlu0 %v702
        %v704 = vpop.xlane.xlu0 %703
        %v705 = vrcp.pop %v704
        %v706 = vmul.f32 %v701, %v705
        %707 = vrot.lane.b32.xlu0 %v616, 96
        %v708 = vpop.permute.xlu0 %707
        %v711 = vsel %vm619, %v706, 0
        %713 = vmatprep.subr.mxu0 0.0
        %714 = vmatpush1.msra.mxu0 %v708
        %715 = vmatprep.subr.mxu0 0.0
        %716 = vmatpush1.msra.mxu0 0.0
        %717 = vmatprep.subr.mxu0 0.0
        %718 = vmatpush1.msra.mxu0 0.0
        %719 = vmatprep.subr.mxu0 0.0
        %720 = vmatpush1.msra.mxu0 0.0
        %721 = vmatprep.subr.mxu0 0.0
        %722 = vmatpush1.msra.mxu0 0.0
        %723 = vmatprep.subr.mxu0 0.0
        %724 = vmatpush1.msra.mxu0 0.0
        %725 = vmatprep.subr.mxu0 0.0
        %726 = vmatpush1.msra.mxu0 0.0
        %727 = vmatprep.subr.mxu0 0.0
        %728 = vmatpush1.msra.mxu0 0.0
        %729 = vmatprep.subr.mxu0 0.0
        %730 = vmatpush1.msra.mxu0 0.0
        %731 = vmatprep.subr.mxu0 0.0
        %732 = vmatpush1.msra.mxu0 0.0
        %733 = vmatprep.subr.mxu0 0.0
        %734 = vmatpush1.msra.mxu0 0.0
        %735 = vmatprep.subr.mxu0 0.0
        %736 = vmatpush1.msra.mxu0 0.0
        %737 = vmatprep.subr.mxu0 0.0
        %738 = vmatpush1.msra.mxu0 0.0
        %739 = vmatprep.subr.mxu0 0.0
        %740 = vmatpush1.msra.mxu0 0.0
        %741 = vmatprep.subr.mxu0 0.0
        %742 = vmatpush1.msra.mxu0 0.0
        %743 = vmatprep.subr.mxu0 0.0
        %744 = vmatpush1.msra.mxu0 0.0
        %745 = vmatprep.subr.mxu0 0.0
        %746 = vmatpush1.msra.mxu0 0.0
        %747 = vmatprep.subr.mxu0 0.0
        %748 = vmatpush1.msra.mxu0 0.0
        %749 = vmatprep.subr.mxu0 0.0
        %750 = vmatpush1.msra.mxu0 0.0
        %751 = vmatprep.subr.mxu0 0.0
        %752 = vmatpush1.msra.mxu0 0.0
        %753 = vmatprep.subr.mxu0 0.0
        %754 = vmatpush1.msra.mxu0 0.0
        %755 = vmatprep.subr.mxu0 0.0
        %756 = vmatpush1.msra.mxu0 0.0
        %757 = vmatprep.subr.mxu0 0.0
        %758 = vmatpush1.msra.mxu0 0.0
        %759 = vmatprep.subr.mxu0 0.0
        %760 = vmatpush1.msra.mxu0 0.0
        %761 = vmatprep.subr.mxu0 0.0
        %762 = vmatpush1.msra.mxu0 0.0
        %763 = vmatprep.subr.mxu0 0.0
        %764 = vmatpush1.msra.mxu0 0.0
        %765 = vmatprep.subr.mxu0 0.0
        %766 = vmatpush1.msra.mxu0 0.0
        %767 = vmatprep.subr.mxu0 0.0
        %768 = vmatpush1.msra.mxu0 0.0
        %769 = vmatprep.subr.mxu0 0.0
        %770 = vmatpush1.msra.mxu0 0.0
        %771 = vmatprep.subr.mxu0 0.0
        %772 = vmatpush1.msra.mxu0 0.0
        %773 = vmatprep.subr.mxu0 0.0
        %774 = vmatpush1.msra.mxu0 0.0
        %775 = vmatprep.subr.mxu0 0.0
        %776 = vmatpush1.msra.mxu0 0.0
        %777 = vmatprep.mubr.f32.mxu0 0.0
        %778 = vmatmul.mubr.f32.gmra.mrb[0].mxu0 %v711
        %v779 = vpop.f32.mrb[0].mxu0
        %v780 = vadd.f32 0.0, %v779
        %v781 = vpop.f32.mrb[0].mxu0
        %782 = vdwg.mxu0
        %783 = vrot.lane.b32.xlu0 %v534, 120
        %v784 = vpop.permute.xlu0 %783
        %785 = vrot.lane.b32.xlu0 %v616, 120
        %v786 = vpop.permute.xlu0 %785
        %v787 = vsel %vm619, %v784, 0
        %v789 = vsel %vm619, %v786, 0
        %791 = vmatprep.subr.mxu0 0.0
        %792 = vmatpush1.xpose.msra.mxu0 %v789
        %793 = vmatprep.subr.mxu0 0.0
        %794 = vmatpush1.xpose.msra.mxu0 0.0
        %795 = vmatprep.subr.mxu0 0.0
        %796 = vmatpush1.xpose.msra.mxu0 0.0
        %797 = vmatprep.subr.mxu0 0.0
        %798 = vmatpush1.xpose.msra.mxu0 0.0
        %799 = vmatprep.subr.mxu0 0.0
        %800 = vmatpush1.xpose.msra.mxu0 0.0
        %801 = vmatprep.subr.mxu0 0.0
        %802 = vmatpush1.xpose.msra.mxu0 0.0
        %803 = vmatprep.subr.mxu0 0.0
        %804 = vmatpush1.xpose.msra.mxu0 0.0
        %805 = vmatprep.subr.mxu0 0.0
        %806 = vmatpush1.xpose.msra.mxu0 0.0
        %807 = vmatprep.subr.mxu0 0.0
        %808 = vmatpush1.xpose.msra.mxu0 0.0
        %809 = vmatprep.subr.mxu0 0.0
        %810 = vmatpush1.xpose.msra.mxu0 0.0
        %811 = vmatprep.subr.mxu0 0.0
        %812 = vmatpush1.xpose.msra.mxu0 0.0
        %813 = vmatprep.subr.mxu0 0.0
        %814 = vmatpush1.xpose.msra.mxu0 0.0
        %815 = vmatprep.subr.mxu0 0.0
        %816 = vmatpush1.xpose.msra.mxu0 0.0
        %817 = vmatprep.subr.mxu0 0.0
        %818 = vmatpush1.xpose.msra.mxu0 0.0
        %819 = vmatprep.subr.mxu0 0.0
        %820 = vmatpush1.xpose.msra.mxu0 0.0
        %821 = vmatprep.subr.mxu0 0.0
        %822 = vmatpush1.xpose.msra.mxu0 0.0
        %823 = vmatprep.subr.mxu0 0.0
        %824 = vmatpush1.xpose.msra.mxu0 0.0
        %825 = vmatprep.subr.mxu0 0.0
        %826 = vmatpush1.xpose.msra.mxu0 0.0
        %827 = vmatprep.subr.mxu0 0.0
        %828 = vmatpush1.xpose.msra.mxu0 0.0
        %829 = vmatprep.subr.mxu0 0.0
        %830 = vmatpush1.xpose.msra.mxu0 0.0
        %831 = vmatprep.subr.mxu0 0.0
        %832 = vmatpush1.xpose.msra.mxu0 0.0
        %833 = vmatprep.subr.mxu0 0.0
        %834 = vmatpush1.xpose.msra.mxu0 0.0
        %835 = vmatprep.subr.mxu0 0.0
        %836 = vmatpush1.xpose.msra.mxu0 0.0
        %837 = vmatprep.subr.mxu0 0.0
        %838 = vmatpush1.xpose.msra.mxu0 0.0
        %839 = vmatprep.subr.mxu0 0.0
        %840 = vmatpush1.xpose.msra.mxu0 0.0
        %841 = vmatprep.subr.mxu0 0.0
        %842 = vmatpush1.xpose.msra.mxu0 0.0
        %843 = vmatprep.subr.mxu0 0.0
        %844 = vmatpush1.xpose.msra.mxu0 0.0
        %845 = vmatprep.subr.mxu0 0.0
        %846 = vmatpush1.xpose.msra.mxu0 0.0
        %847 = vmatprep.subr.mxu0 0.0
        %848 = vmatpush1.xpose.msra.mxu0 0.0
        %849 = vmatprep.subr.mxu0 0.0
        %850 = vmatpush1.xpose.msra.mxu0 0.0
        %851 = vmatprep.subr.mxu0 0.0
        %852 = vmatpush1.xpose.msra.mxu0 0.0
        %853 = vmatprep.subr.mxu0 0.0
        %854 = vmatpush1.xpose.msra.mxu0 0.0
        %855 = vmatprep.mubr.f32.mxu0 0.0
        %856 = vmatmul.mubr.f32.gmra.mrb[0].mxu0 %v787
        %v857 = vpop.f32.mrb[0].mxu0
        %v858 = vadd.f32 0.0, %v857
        %v859 = vpop.f32.mrb[0].mxu0
        %860 = vdwg.mxu0
        %v861 = vsel %vm619, %v858, -inf
        %862 = vmax.xlane.f32.xlu0 %v861
        %v863 = vpop.xlane.xlu0 %862
        %v864 = vsub.f32 %v858, %v863
        %v865 = vmul.f32 %v864, 1.442695
        %v866 = vpow.pop %v865
        %v867 = vsel %vm619, %v866, 0.0
        %868 = vadd.xlane.f32.xlu0 %v867
        %v869 = vpop.xlane.xlu0 %868
        %v870 = vrcp.pop %v869
        %v871 = vmul.f32 %v866, %v870
        %872 = vrot.lane.b32.xlu0 %v616, 88
        %v873 = vpop.permute.xlu0 %872
        %v876 = vsel %vm619, %v871, 0
        %878 = vmatprep.subr.mxu0 0.0
        %879 = vmatpush1.msra.mxu0 %v873
        %880 = vmatprep.subr.mxu0 0.0
        %881 = vmatpush1.msra.mxu0 0.0
        %882 = vmatprep.subr.mxu0 0.0
        %883 = vmatpush1.msra.mxu0 0.0
        %884 = vmatprep.subr.mxu0 0.0
        %885 = vmatpush1.msra.mxu0 0.0
        %886 = vmatprep.subr.mxu0 0.0
        %887 = vmatpush1.msra.mxu0 0.0
        %888 = vmatprep.subr.mxu0 0.0
        %889 = vmatpush1.msra.mxu0 0.0
        %890 = vmatprep.subr.mxu0 0.0
        %891 = vmatpush1.msra.mxu0 0.0
        %892 = vmatprep.subr.mxu0 0.0
        %893 = vmatpush1.msra.mxu0 0.0
        %894 = vmatprep.subr.mxu0 0.0
        %895 = vmatpush1.msra.mxu0 0.0
        %896 = vmatprep.subr.mxu0 0.0
        %897 = vmatpush1.msra.mxu0 0.0
        %898 = vmatprep.subr.mxu0 0.0
        %899 = vmatpush1.msra.mxu0 0.0
        %900 = vmatprep.subr.mxu0 0.0
        %901 = vmatpush1.msra.mxu0 0.0
        %902 = vmatprep.subr.mxu0 0.0
        %903 = vmatpush1.msra.mxu0 0.0
        %904 = vmatprep.subr.mxu0 0.0
        %905 = vmatpush1.msra.mxu0 0.0
        %906 = vmatprep.subr.mxu0 0.0
        %907 = vmatpush1.msra.mxu0 0.0
        %908 = vmatprep.subr.mxu0 0.0
        %909 = vmatpush1.msra.mxu0 0.0
        %910 = vmatprep.subr.mxu0 0.0
        %911 = vmatpush1.msra.mxu0 0.0
        %912 = vmatprep.subr.mxu0 0.0
        %913 = vmatpush1.msra.mxu0 0.0
        %914 = vmatprep.subr.mxu0 0.0
        %915 = vmatpush1.msra.mxu0 0.0
        %916 = vmatprep.subr.mxu0 0.0
        %917 = vmatpush1.msra.mxu0 0.0
        %918 = vmatprep.subr.mxu0 0.0
        %919 = vmatpush1.msra.mxu0 0.0
        %920 = vmatprep.subr.mxu0 0.0
        %921 = vmatpush1.msra.mxu0 0.0
        %922 = vmatprep.subr.mxu0 0.0
        %923 = vmatpush1.msra.mxu0 0.0
        %924 = vmatprep.subr.mxu0 0.0
        %925 = vmatpush1.msra.mxu0 0.0
        %926 = vmatprep.subr.mxu0 0.0
        %927 = vmatpush1.msra.mxu0 0.0
        %928 = vmatprep.subr.mxu0 0.0
        %929 = vmatpush1.msra.mxu0 0.0
        %930 = vmatprep.subr.mxu0 0.0
        %931 = vmatpush1.msra.mxu0 0.0
        %932 = vmatprep.subr.mxu0 0.0
        %933 = vmatpush1.msra.mxu0 0.0
        %934 = vmatprep.subr.mxu0 0.0
        %935 = vmatpush1.msra.mxu0 0.0
        %936 = vmatprep.subr.mxu0 0.0
        %937 = vmatpush1.msra.mxu0 0.0
        %938 = vmatprep.subr.mxu0 0.0
        %939 = vmatpush1.msra.mxu0 0.0
        %940 = vmatprep.subr.mxu0 0.0
        %941 = vmatpush1.msra.mxu0 0.0
        %942 = vmatprep.mubr.f32.mxu0 0.0
        %943 = vmatmul.mubr.f32.gmra.mrb[0].mxu0 %v876
        %v944 = vpop.f32.mrb[0].mxu0
        %v945 = vadd.f32 0.0, %v944
        %v946 = vpop.f32.mrb[0].mxu0
        %947 = vdwg.mxu0
        %948 = vrot.lane.b32.xlu0 %v534, 112
        %v949 = vpop.permute.xlu0 %948
        %950 = vrot.lane.b32.xlu0 %v616, 112
        %v951 = vpop.permute.xlu0 %950
        %v952 = vsel %vm619, %v949, 0
        %v954 = vsel %vm619, %v951, 0
        %956 = vmatprep.subr.mxu0 0.0
        %957 = vmatpush1.xpose.msra.mxu0 %v954
        %958 = vmatprep.subr.mxu0 0.0
        %959 = vmatpush1.xpose.msra.mxu0 0.0
        %960 = vmatprep.subr.mxu0 0.0
        %961 = vmatpush1.xpose.msra.mxu0 0.0
        %962 = vmatprep.subr.mxu0 0.0
        %963 = vmatpush1.xpose.msra.mxu0 0.0
        %964 = vmatprep.subr.mxu0 0.0
        %965 = vmatpush1.xpose.msra.mxu0 0.0
        %966 = vmatprep.subr.mxu0 0.0
        %967 = vmatpush1.xpose.msra.mxu0 0.0
        %968 = vmatprep.subr.mxu0 0.0
        %969 = vmatpush1.xpose.msra.mxu0 0.0
        %970 = vmatprep.subr.mxu0 0.0
        %971 = vmatpush1.xpose.msra.mxu0 0.0
        %972 = vmatprep.subr.mxu0 0.0
        %973 = vmatpush1.xpose.msra.mxu0 0.0
        %974 = vmatprep.subr.mxu0 0.0
        %975 = vmatpush1.xpose.msra.mxu0 0.0
        %976 = vmatprep.subr.mxu0 0.0
        %977 = vmatpush1.xpose.msra.mxu0 0.0
        %978 = vmatprep.subr.mxu0 0.0
        %979 = vmatpush1.xpose.msra.mxu0 0.0
        %980 = vmatprep.subr.mxu0 0.0
        %981 = vmatpush1.xpose.msra.mxu0 0.0
        %982 = vmatprep.subr.mxu0 0.0
        %983 = vmatpush1.xpose.msra.mxu0 0.0
        %984 = vmatprep.subr.mxu0 0.0
        %985 = vmatpush1.xpose.msra.mxu0 0.0
        %986 = vmatprep.subr.mxu0 0.0
        %987 = vmatpush1.xpose.msra.mxu0 0.0
        %988 = vmatprep.subr.mxu0 0.0
        %989 = vmatpush1.xpose.msra.mxu0 0.0
        %990 = vmatprep.subr.mxu0 0.0
        %991 = vmatpush1.xpose.msra.mxu0 0.0
        %992 = vmatprep.subr.mxu0 0.0
        %993 = vmatpush1.xpose.msra.mxu0 0.0
        %994 = vmatprep.subr.mxu0 0.0
        %995 = vmatpush1.xpose.msra.mxu0 0.0
        %996 = vmatprep.subr.mxu0 0.0
        %997 = vmatpush1.xpose.msra.mxu0 0.0
        %998 = vmatprep.subr.mxu0 0.0
        %999 = vmatpush1.xpose.msra.mxu0 0.0
        %1000 = vmatprep.subr.mxu0 0.0
        %1001 = vmatpush1.xpose.msra.mxu0 0.0
        %1002 = vmatprep.subr.mxu0 0.0
        %1003 = vmatpush1.xpose.msra.mxu0 0.0
        %1004 = vmatprep.subr.mxu0 0.0
        %1005 = vmatpush1.xpose.msra.mxu0 0.0
        %1006 = vmatprep.subr.mxu0 0.0
        %1007 = vmatpush1.xpose.msra.mxu0 0.0
        %1008 = vmatprep.subr.mxu0 0.0
        %1009 = vmatpush1.xpose.msra.mxu0 0.0
        %1010 = vmatprep.subr.mxu0 0.0
        %1011 = vmatpush1.xpose.msra.mxu0 0.0
        %1012 = vmatprep.subr.mxu0 0.0
        %1013 = vmatpush1.xpose.msra.mxu0 0.0
        %1014 = vmatprep.subr.mxu0 0.0
        %1015 = vmatpush1.xpose.msra.mxu0 0.0
        %1016 = vmatprep.subr.mxu0 0.0
        %1017 = vmatpush1.xpose.msra.mxu0 0.0
        %1018 = vmatprep.subr.mxu0 0.0
        %1019 = vmatpush1.xpose.msra.mxu0 0.0
        %1020 = vmatprep.mubr.f32.mxu0 0.0
        %1021 = vmatmul.mubr.f32.gmra.mrb[0].mxu0 %v952
        %v1022 = vpop.f32.mrb[0].mxu0
        %v1023 = vadd.f32 0.0, %v1022
        %v1024 = vpop.f32.mrb[0].mxu0
        %1025 = vdwg.mxu0
        %v1026 = vsel %vm619, %v1023, -inf
        %1027 = vmax.xlane.f32.xlu0 %v1026
        %v1028 = vpop.xlane.xlu0 %1027
        %v1029 = vsub.f32 %v1023, %v1028
        %v1030 = vmul.f32 %v1029, 1.442695
        %v1031 = vpow.pop %v1030
        %v1032 = vsel %vm619, %v1031, 0.0
        %1033 = vadd.xlane.f32.xlu0 %v1032
        %v1034 = vpop.xlane.xlu0 %1033
        %v1035 = vrcp.pop %v1034
        %v1036 = vmul.f32 %v1031, %v1035
        %1037 = vrot.lane.b32.xlu0 %v616, 80
        %v1038 = vpop.permute.xlu0 %1037
        %v1041 = vsel %vm619, %v1036, 0
        %1043 = vmatprep.subr.mxu0 0.0
        %1044 = vmatpush1.msra.mxu0 %v1038
        %1045 = vmatprep.subr.mxu0 0.0
        %1046 = vmatpush1.msra.mxu0 0.0
        %1047 = vmatprep.subr.mxu0 0.0
        %1048 = vmatpush1.msra.mxu0 0.0
        %1049 = vmatprep.subr.mxu0 0.0
        %1050 = vmatpush1.msra.mxu0 0.0
        %1051 = vmatprep.subr.mxu0 0.0
        %1052 = vmatpush1.msra.mxu0 0.0
        %1053 = vmatprep.subr.mxu0 0.0
        %1054 = vmatpush1.msra.mxu0 0.0
        %1055 = vmatprep.subr.mxu0 0.0
        %1056 = vmatpush1.msra.mxu0 0.0
        %1057 = vmatprep.subr.mxu0 0.0
        %1058 = vmatpush1.msra.mxu0 0.0
        %1059 = vmatprep.subr.mxu0 0.0
        %1060 = vmatpush1.msra.mxu0 0.0
        %1061 = vmatprep.subr.mxu0 0.0
        %1062 = vmatpush1.msra.mxu0 0.0
        %1063 = vmatprep.subr.mxu0 0.0
        %1064 = vmatpush1.msra.mxu0 0.0
        %1065 = vmatprep.subr.mxu0 0.0
        %1066 = vmatpush1.msra.mxu0 0.0
        %1067 = vmatprep.subr.mxu0 0.0
        %1068 = vmatpush1.msra.mxu0 0.0
        %1069 = vmatprep.subr.mxu0 0.0
        %1070 = vmatpush1.msra.mxu0 0.0
        %1071 = vmatprep.subr.mxu0 0.0
        %1072 = vmatpush1.msra.mxu0 0.0
        %1073 = vmatprep.subr.mxu0 0.0
        %1074 = vmatpush1.msra.mxu0 0.0
        %1075 = vmatprep.subr.mxu0 0.0
        %1076 = vmatpush1.msra.mxu0 0.0
        %1077 = vmatprep.subr.mxu0 0.0
        %1078 = vmatpush1.msra.mxu0 0.0
        %1079 = vmatprep.subr.mxu0 0.0
        %1080 = vmatpush1.msra.mxu0 0.0
        %1081 = vmatprep.subr.mxu0 0.0
        %1082 = vmatpush1.msra.mxu0 0.0
        %1083 = vmatprep.subr.mxu0 0.0
        %1084 = vmatpush1.msra.mxu0 0.0
        %1085 = vmatprep.subr.mxu0 0.0
        %1086 = vmatpush1.msra.mxu0 0.0
        %1087 = vmatprep.subr.mxu0 0.0
        %1088 = vmatpush1.msra.mxu0 0.0
        %1089 = vmatprep.subr.mxu0 0.0
        %1090 = vmatpush1.msra.mxu0 0.0
        %1091 = vmatprep.subr.mxu0 0.0
        %1092 = vmatpush1.msra.mxu0 0.0
        %1093 = vmatprep.subr.mxu0 0.0
        %1094 = vmatpush1.msra.mxu0 0.0
        %1095 = vmatprep.subr.mxu0 0.0
        %1096 = vmatpush1.msra.mxu0 0.0
        %1097 = vmatprep.subr.mxu0 0.0
        %1098 = vmatpush1.msra.mxu0 0.0
        %1099 = vmatprep.subr.mxu0 0.0
        %1100 = vmatpush1.msra.mxu0 0.0
        %1101 = vmatprep.subr.mxu0 0.0
        %1102 = vmatpush1.msra.mxu0 0.0
        %1103 = vmatprep.subr.mxu0 0.0
        %1104 = vmatpush1.msra.mxu0 0.0
        %1105 = vmatprep.subr.mxu0 0.0
        %1106 = vmatpush1.msra.mxu0 0.0
        %1107 = vmatprep.mubr.f32.mxu0 0.0
        %1108 = vmatmul.mubr.f32.gmra.mrb[0].mxu0 %v1041
        %v1109 = vpop.f32.mrb[0].mxu0
        %v1110 = vadd.f32 0.0, %v1109
        %v1111 = vpop.f32.mrb[0].mxu0
        %1112 = vdwg.mxu0
        %1113 = vrot.lane.b32.xlu0 %v534, 104
        %v1114 = vpop.permute.xlu0 %1113
        %1115 = vrot.lane.b32.xlu0 %v616, 104
        %v1116 = vpop.permute.xlu0 %1115
        %v1117 = vsel %vm619, %v1114, 0
        %v1119 = vsel %vm619, %v1116, 0
        %1121 = vmatprep.subr.mxu0 0.0
        %1122 = vmatpush1.xpose.msra.mxu0 %v1119
        %1123 = vmatprep.subr.mxu0 0.0
        %1124 = vmatpush1.xpose.msra.mxu0 0.0
        %1125 = vmatprep.subr.mxu0 0.0
        %1126 = vmatpush1.xpose.msra.mxu0 0.0
        %1127 = vmatprep.subr.mxu0 0.0
        %1128 = vmatpush1.xpose.msra.mxu0 0.0
        %1129 = vmatprep.subr.mxu0 0.0
        %1130 = vmatpush1.xpose.msra.mxu0 0.0
        %1131 = vmatprep.subr.mxu0 0.0
        %1132 = vmatpush1.xpose.msra.mxu0 0.0
        %1133 = vmatprep.subr.mxu0 0.0
        %1134 = vmatpush1.xpose.msra.mxu0 0.0
        %1135 = vmatprep.subr.mxu0 0.0
        %1136 = vmatpush1.xpose.msra.mxu0 0.0
        %1137 = vmatprep.subr.mxu0 0.0
        %1138 = vmatpush1.xpose.msra.mxu0 0.0
        %1139 = vmatprep.subr.mxu0 0.0
        %1140 = vmatpush1.xpose.msra.mxu0 0.0
        %1141 = vmatprep.subr.mxu0 0.0
        %1142 = vmatpush1.xpose.msra.mxu0 0.0
        %1143 = vmatprep.subr.mxu0 0.0
        %1144 = vmatpush1.xpose.msra.mxu0 0.0
        %1145 = vmatprep.subr.mxu0 0.0
        %1146 = vmatpush1.xpose.msra.mxu0 0.0
        %1147 = vmatprep.subr.mxu0 0.0
        %1148 = vmatpush1.xpose.msra.mxu0 0.0
        %1149 = vmatprep.subr.mxu0 0.0
        %1150 = vmatpush1.xpose.msra.mxu0 0.0
        %1151 = vmatprep.subr.mxu0 0.0
        %1152 = vmatpush1.xpose.msra.mxu0 0.0
        %1153 = vmatprep.subr.mxu0 0.0
        %1154 = vmatpush1.xpose.msra.mxu0 0.0
        %1155 = vmatprep.subr.mxu0 0.0
        %1156 = vmatpush1.xpose.msra.mxu0 0.0
        %1157 = vmatprep.subr.mxu0 0.0
        %1158 = vmatpush1.xpose.msra.mxu0 0.0
        %1159 = vmatprep.subr.mxu0 0.0
        %1160 = vmatpush1.xpose.msra.mxu0 0.0
        %1161 = vmatprep.subr.mxu0 0.0
        %1162 = vmatpush1.xpose.msra.mxu0 0.0
        %1163 = vmatprep.subr.mxu0 0.0
        %1164 = vmatpush1.xpose.msra.mxu0 0.0
        %1165 = vmatprep.subr.mxu0 0.0
        %1166 = vmatpush1.xpose.msra.mxu0 0.0
        %1167 = vmatprep.subr.mxu0 0.0
        %1168 = vmatpush1.xpose.msra.mxu0 0.0
        %1169 = vmatprep.subr.mxu0 0.0
        %1170 = vmatpush1.xpose.msra.mxu0 0.0
        %1171 = vmatprep.subr.mxu0 0.0
        %1172 = vmatpush1.xpose.msra.mxu0 0.0
        %1173 = vmatprep.subr.mxu0 0.0
        %1174 = vmatpush1.xpose.msra.mxu0 0.0
        %1175 = vmatprep.subr.mxu0 0.0
        %1176 = vmatpush1.xpose.msra.mxu0 0.0
        %1177 = vmatprep.subr.mxu0 0.0
        %1178 = vmatpush1.xpose.msra.mxu0 0.0
        %1179 = vmatprep.subr.mxu0 0.0
        %1180 = vmatpush1.xpose.msra.mxu0 0.0
        %1181 = vmatprep.subr.mxu0 0.0
        %1182 = vmatpush1.xpose.msra.mxu0 0.0
        %1183 = vmatprep.subr.mxu0 0.0
        %1184 = vmatpush1.xpose.msra.mxu0 0.0
        %1185 = vmatprep.mubr.f32.mxu0 0.0
        %1186 = vmatmul.mubr.f32.gmra.mrb[0].mxu0 %v1117
        %v1187 = vpop.f32.mrb[0].mxu0
        %v1188 = vadd.f32 0.0, %v1187
        %v1189 = vpop.f32.mrb[0].mxu0
        %1190 = vdwg.mxu0
        %v1191 = vsel %vm619, %v1188, -inf
        %1192 = vmax.xlane.f32.xlu0 %v1191
        %v1193 = vpop.xlane.xlu0 %1192
        %v1194 = vsub.f32 %v1188, %v1193
        %v1195 = vmul.f32 %v1194, 1.442695
        %v1196 = vpow.pop %v1195
        %v1197 = vsel %vm619, %v1196, 0.0
        %1198 = vadd.xlane.f32.xlu0 %v1197
        %v1199 = vpop.xlane.xlu0 %1198
        %v1200 = vrcp.pop %v1199
        %v1201 = vmul.f32 %v1196, %v1200
        %1202 = vrot.lane.b32.xlu0 %v616, 72
        %v1203 = vpop.permute.xlu0 %1202
        %v1206 = vsel %vm619, %v1201, 0
        %1208 = vmatprep.subr.mxu0 0.0
        %1209 = vmatpush1.msra.mxu0 %v1203
        %1210 = vmatprep.subr.mxu0 0.0
        %1211 = vmatpush1.msra.mxu0 0.0
        %1212 = vmatprep.subr.mxu0 0.0
        %1213 = vmatpush1.msra.mxu0 0.0
        %1214 = vmatprep.subr.mxu0 0.0
        %1215 = vmatpush1.msra.mxu0 0.0
        %1216 = vmatprep.subr.mxu0 0.0
        %1217 = vmatpush1.msra.mxu0 0.0
        %1218 = vmatprep.subr.mxu0 0.0
        %1219 = vmatpush1.msra.mxu0 0.0
        %1220 = vmatprep.subr.mxu0 0.0
        %1221 = vmatpush1.msra.mxu0 0.0
        %1222 = vmatprep.subr.mxu0 0.0
        %1223 = vmatpush1.msra.mxu0 0.0
        %1224 = vmatprep.subr.mxu0 0.0
        %1225 = vmatpush1.msra.mxu0 0.0
        %1226 = vmatprep.subr.mxu0 0.0
        %1227 = vmatpush1.msra.mxu0 0.0
        %1228 = vmatprep.subr.mxu0 0.0
        %1229 = vmatpush1.msra.mxu0 0.0
        %1230 = vmatprep.subr.mxu0 0.0
        %1231 = vmatpush1.msra.mxu0 0.0
        %1232 = vmatprep.subr.mxu0 0.0
        %1233 = vmatpush1.msra.mxu0 0.0
        %1234 = vmatprep.subr.mxu0 0.0
        %1235 = vmatpush1.msra.mxu0 0.0
        %1236 = vmatprep.subr.mxu0 0.0
        %1237 = vmatpush1.msra.mxu0 0.0
        %1238 = vmatprep.subr.mxu0 0.0
        %1239 = vmatpush1.msra.mxu0 0.0
        %1240 = vmatprep.subr.mxu0 0.0
        %1241 = vmatpush1.msra.mxu0 0.0
        %1242 = vmatprep.subr.mxu0 0.0
        %1243 = vmatpush1.msra.mxu0 0.0
        %1244 = vmatprep.subr.mxu0 0.0
        %1245 = vmatpush1.msra.mxu0 0.0
        %1246 = vmatprep.subr.mxu0 0.0
        %1247 = vmatpush1.msra.mxu0 0.0
        %1248 = vmatprep.subr.mxu0 0.0
        %1249 = vmatpush1.msra.mxu0 0.0
        %1250 = vmatprep.subr.mxu0 0.0
        %1251 = vmatpush1.msra.mxu0 0.0
        %1252 = vmatprep.subr.mxu0 0.0
        %1253 = vmatpush1.msra.mxu0 0.0
        %1254 = vmatprep.subr.mxu0 0.0
        %1255 = vmatpush1.msra.mxu0 0.0
        %1256 = vmatprep.subr.mxu0 0.0
        %1257 = vmatpush1.msra.mxu0 0.0
        %1258 = vmatprep.subr.mxu0 0.0
        %1259 = vmatpush1.msra.mxu0 0.0
        %1260 = vmatprep.subr.mxu0 0.0
        %1261 = vmatpush1.msra.mxu0 0.0
        %1262 = vmatprep.subr.mxu0 0.0
        %1263 = vmatpush1.msra.mxu0 0.0
        %1264 = vmatprep.subr.mxu0 0.0
        %1265 = vmatpush1.msra.mxu0 0.0
        %1266 = vmatprep.subr.mxu0 0.0
        %1267 = vmatpush1.msra.mxu0 0.0
        %1268 = vmatprep.subr.mxu0 0.0
        %1269 = vmatpush1.msra.mxu0 0.0
        %1270 = vmatprep.subr.mxu0 0.0
        %1271 = vmatpush1.msra.mxu0 0.0
        %1272 = vmatprep.mubr.f32.mxu0 0.0
        %1273 = vmatmul.mubr.f32.gmra.mrb[0].mxu0 %v1206
        %v1274 = vpop.f32.mrb[0].mxu0
        %v1275 = vadd.f32 0.0, %v1274
        %v1276 = vpop.f32.mrb[0].mxu0
        %1277 = vdwg.mxu0
        %1279 = vrot.lane.b32.xlu0 %v945, 8
        %v1280 = vpop.permute.xlu0 %1279
        %1283 = vrot.lane.b32.xlu0 %v1110, 16
        %v1284 = vpop.permute.xlu0 %1283
        %1287 = vrot.lane.b32.xlu0 %v1275, 24
        %v1288 = vpop.permute.xlu0 %1287
        %v1290 = vsel %vm619, %v780, %v1280
        %vm1291 = vcmask 130048
        %v1292 = vsel %vm1291, %v1290, %v1284
        %vm1293 = vcmask 195584
        %v1294 = vsel %vm1293, %v1292, %v1288
        %v1295 = vld [vmem:[%s8] sm:$0xff]
        %v1296 = vld [vmem:[%s8 + $0x8] sm:$0xff]
        %v1297 = vld [vmem:[%s8 + $0x10] sm:$0xff]
        %v1298 = vld [vmem:[%s8 + $0x18] sm:$0xff]
        %v1299 = vld [vmem:[#allocation6] sm:$0x1]
        %v1301 = vlaneseq
        %v1302 = vshrl.u32 %v1301, 7
        %v1303 = vsub.s32 0, %v1302
        %v1304 = vrot.slane %v1299, %v1303
        %v1307 = vsel %vm414, %v1294, 0
        %1309 = vmatprep.subr.mxu0 0.0
        %1310 = vmatpush1.msra.mxu0 %v1295
        %1311 = vmatprep.subr.mxu0 0.0
        %1312 = vmatpush1.msra.mxu0 %v1296
        %1313 = vmatprep.subr.mxu0 0.0
        %1314 = vmatpush1.msra.mxu0 %v1297
        %1315 = vmatprep.subr.mxu0 0.0
        %1316 = vmatpush1.msra.mxu0 %v1298
        %1317 = vmatprep.subr.mxu0 0.0
        %1318 = vmatpush1.msra.mxu0 0.0
        %1319 = vmatprep.subr.mxu0 0.0
        %1320 = vmatpush1.msra.mxu0 0.0
        %1321 = vmatprep.subr.mxu0 0.0
        %1322 = vmatpush1.msra.mxu0 0.0
        %1323 = vmatprep.subr.mxu0 0.0
        %1324 = vmatpush1.msra.mxu0 0.0
        %1325 = vmatprep.subr.mxu0 0.0
        %1326 = vmatpush1.msra.mxu0 0.0
        %1327 = vmatprep.subr.mxu0 0.0
        %1328 = vmatpush1.msra.mxu0 0.0
        %1329 = vmatprep.subr.mxu0 0.0
        %1330 = vmatpush1.msra.mxu0 0.0
        %1331 = vmatprep.subr.mxu0 0.0
        %1332 = vmatpush1.msra.mxu0 0.0
        %1333 = vmatprep.subr.mxu0 0.0
        %1334 = vmatpush1.msra.mxu0 0.0
        %1335 = vmatprep.subr.mxu0 0.0
        %1336 = vmatpush1.msra.mxu0 0.0
        %1337 = vmatprep.subr.mxu0 0.0
        %1338 = vmatpush1.msra.mxu0 0.0
        %1339 = vmatprep.subr.mxu0 0.0
        %1340 = vmatpush1.msra.mxu0 0.0
        %1341 = vmatprep.subr.mxu0 0.0
        %1342 = vmatpush1.msra.mxu0 0.0
        %1343 = vmatprep.subr.mxu0 0.0
        %1344 = vmatpush1.msra.mxu0 0.0
        %1345 = vmatprep.subr.mxu0 0.0
        %1346 = vmatpush1.msra.mxu0 0.0
        %1347 = vmatprep.subr.mxu0 0.0
        %1348 = vmatpush1.msra.mxu0 0.0
        %1349 = vmatprep.subr.mxu0 0.0
        %1350 = vmatpush1.msra.mxu0 0.0
        %1351 = vmatprep.subr.mxu0 0.0
        %1352 = vmatpush1.msra.mxu0 0.0
        %1353 = vmatprep.subr.mxu0 0.0
        %1354 = vmatpush1.msra.mxu0 0.0
        %1355 = vmatprep.subr.mxu0 0.0
        %1356 = vmatpush1.msra.mxu0 0.0
        %1357 = vmatprep.subr.mxu0 0.0
        %1358 = vmatpush1.msra.mxu0 0.0
        %1359 = vmatprep.subr.mxu0 0.0
        %1360 = vmatpush1.msra.mxu0 0.0
        %1361 = vmatprep.subr.mxu0 0.0
        %1362 = vmatpush1.msra.mxu0 0.0
        %1363 = vmatprep.subr.mxu0 0.0
        %1364 = vmatpush1.msra.mxu0 0.0
        %1365 = vmatprep.subr.mxu0 0.0
        %1366 = vmatpush1.msra.mxu0 0.0
        %1367 = vmatprep.subr.mxu0 0.0
        %1368 = vmatpush1.msra.mxu0 0.0
        %1369 = vmatprep.subr.mxu0 0.0
        %1370 = vmatpush1.msra.mxu0 0.0
        %1371 = vmatprep.subr.mxu0 0.0
        %1372 = vmatpush1.msra.mxu0 0.0
        %1373 = vmatprep.mubr.f32.mxu0 0.0
        %1374 = vmatmul.mubr.f32.gmra.mrb[0].mxu0 %v1307
        %v1375 = vpop.f32.mrb[0].mxu0
        %v1376 = vadd.f32 %v1304, %v1375
        %v1377 = vpop.f32.mrb[0].mxu0
        %1378 = vdwg.mxu0
        %v1379 = vadd.f32 %v410, %v1376
        %1380 = vst.msk [vmem:[%s409] sm:$0xff] %vm414, %v1379
        %p1381 = scmp.lt.s32.totalorder %s23, 1
        %s1382 = scalar_select %p1381, %s23, 1
        %s1383 = smul.addr %s1382, 8
        %s1384 = scalar_lea.vmem %s10, %s1383
        // Predicated region
        $region73: #{cross_attention_encoder_layer.2} parent=59 // pred_check
          %p1385 = pneg %p261
        $region74: #{cross_attention_encoder_layer.2} parent=59 // pred_check_branch
          %1387 = sbr.rel (%p1385) target = $region76
        $region75: #{cross_attention_encoder_layer.2} parent=59 // pred_region
          _
        $region76: #{cross_attention_encoder_layer.2} parent=59 // pred_fallthru
          _
      $region60: #{cross_attention_encoder_layer.2} parent=5 // pred_fallthru
        _
      %p1388 = scmp.le.s32.totalorder 2, %s18
      // Predicated region
      $region77: #{cross_attention_encoder_layer.2} parent=5 // pred_check
        %p1389 = pneg %p1388
      $region78: #{cross_attention_encoder_layer.2} parent=5 // pred_check_branch
        %1391 = sbr.rel (%p1389) target = $region80
      $region79: #{cross_attention_encoder_layer.2} parent=5 // pred_region
        %s1392 = ssub.s32 %s18, 2
        // Predicated region
        $region81: #{cross_attention_encoder_layer.2} parent=79 // pred_check
          %p1393 = pneg %p267
        $region82: #{cross_attention_encoder_layer.2} parent=79 // pred_check_branch
          %1395 = sbr.rel (%p1393) target = $region84
        $region83: #{cross_attention_encoder_layer.2} parent=79 // pred_region
          %p1396 = scmp.lt.s32.totalorder %s24, 1
          %s1397 = scalar_select %p1396, %s24, 1
          %s1398 = smul.addr %s1397, 8
          %s1399 = scalar_lea.vmem %s10, %s1398
        $region84: #{cross_attention_encoder_layer.2} parent=79 // pred_fallthru
          _
      $region80: #{cross_attention_encoder_layer.2} parent=5 // pred_fallthru
        _
    $region6: #{cross_attention_encoder_layer.2} parent=1 // loop_footer
      %s22 = sadd.s32 1, %s18
    $region7: #{cross_attention_encoder_layer.2} parent=1 // loop_footer_branch
      %17 = sbr.rel target = $region3
    $region8: #{cross_attention_encoder_layer.2} parent=1 // loop_exit
      _
    %1400 = vsyncpa [#allocation3], 1
    %s1401 = scalar_lea.sflag [#allocation3], 1
    %1402 = vsyncpa %s1401, 1
    %1403 = vsyncpa [#allocation5], 1

</llo_original>
